<compile_context>
chip_gen: v7x
topology: tpu7x:2x2x1
jax: 0.10.0
libtpu: 0.0.40
codegen_flags: <defaults>
</compile_context>

<pallas_src>
import functools

import jax
import jax.numpy as jnp
from jax.experimental import pallas as pl
from jax.experimental.pallas import tpu as pltpu


def _mask_attention_kernel(x_ref, bias_ref, wqkv_ref, wout_ref, bo_ref, o_ref,
                           *, heads, dim_head, scale):
    # x_ref   : (Bt, N, dim)
    # bias_ref: (Bt, N, N)  additive mask bias (-1e9 where masked, else 0)
    # wqkv_ref: (dim, 3*inner)  lane-dense slab, columns = [q | k | v], head-major
    # wout_ref: (inner, dim)
    # bo_ref  : (1, dim)
    # o_ref   : (Bt, N, dim)
    bt, n, dim = x_ref.shape
    inner = heads * dim_head

    # One fused lane-dense QKV projection: (Bt*N, dim) @ (dim, 3*inner).
    x2 = x_ref[...].reshape(bt * n, dim)
    qkv = jnp.dot(x2, wqkv_ref[...], preferred_element_type=jnp.float32)
    qkv = qkv.reshape(bt, n, 3 * inner).astype(x_ref.dtype)

    bias = bias_ref[...].astype(jnp.float32)            # (Bt, N, N)

    head_outs = []
    for h in range(heads):                               # static unroll, H small
        lo = h * dim_head
        hi = lo + dim_head
        q_h = qkv[:, :, lo:hi]                           # (Bt, N, D)
        k_h = qkv[:, :, inner + lo:inner + hi]           # (Bt, N, D)
        v_h = qkv[:, :, 2 * inner + lo:2 * inner + hi]   # (Bt, N, D)

        dots = jnp.einsum('bnd,bmd->bnm', q_h, k_h,
                          preferred_element_type=jnp.float32) * scale + bias
        dots = dots - jnp.max(dots, axis=-1, keepdims=True)   # stable softmax
        p = jnp.exp(dots)                                      # (Bt, N, N) f32
        # Deferred normalization via the EUP approximate reciprocal.
        rinv = pl.reciprocal(jnp.sum(p, axis=-1, keepdims=True), approx=True)
        oh = jnp.einsum('bnm,bmd->bnd', p.astype(v_h.dtype), v_h,
                        preferred_element_type=jnp.float32) * rinv
        head_outs.append(oh.astype(x_ref.dtype))

    # concat_h(oh) @ W_out^T as ONE 256-deep contraction (no per-head adds).
    oh_all = jnp.concatenate(head_outs, axis=-1).reshape(bt * n, inner)
    out = jnp.dot(oh_all, wout_ref[...], preferred_element_type=jnp.float32)
    out = out + bo_ref[...].astype(jnp.float32)
    o_ref[...] = out.reshape(bt, n, dim).astype(o_ref.dtype)


def _pick_batch_block(batch, n, target_rows=256):
    """Largest divisor of `batch` keeping >=2 grid steps (when batch >= 2) and
    at most ~target_rows sublane rows (Bt*N) per block."""
    best = 1
    for bt in range(1, batch + 1):
        if batch % bt:
            continue
        if batch >= 2 and batch // bt < 2:
            continue
        if bt * n <= target_rows:
            best = bt
    return best


def mask_attention(x, attn_mask, w_qkv, w_out, b_out, *, heads=8, dim_head=32,
                   batch_block=None):
    """Pallas equivalent of Mask_Attention.forward (dropout p=0 -> identity).

    x:         (B, N, dim)
    attn_mask: (B, N, N) bool, True == masked out (filled with -1e9 pre-softmax)
    w_qkv:     (3*heads*dim_head, dim)   -- PyTorch nn.Linear weight layout
    w_out:     (dim, heads*dim_head)
    b_out:     (dim,)
    """
    B, N, dim = x.shape
    inner = heads * dim_head
    assert w_qkv.shape == (3 * inner, dim)
    assert w_out.shape == (dim, inner)
    assert b_out.shape == (dim,)
    scale = float(dim_head) ** -0.5

    bt = batch_block or _pick_batch_block(B, N)
    assert B % bt == 0

    # Wrapper-side layout plumbing (one-time XLA work):
    wqkv = jnp.transpose(w_qkv).astype(x.dtype)          # (dim, 3*inner) slab
    wout = jnp.transpose(w_out).astype(x.dtype)          # (inner, dim) slab
    b2 = b_out.reshape(1, dim)
    # Additive mask bias in bf16 (half the traffic of int32; removes compare+select).
    bias = jnp.where(attn_mask, jnp.float32(-1e9),
                     jnp.float32(0.0)).astype(jnp.bfloat16)

    kernel = functools.partial(_mask_attention_kernel, heads=heads,
                               dim_head=dim_head, scale=scale)

    # NOTE: per-step VMEM here is tiny (KBs); at much larger Bt/N set
    # pltpu.CompilerParams(vmem_limit_bytes=...) explicitly (v7x: 64 MiB phys).
    return pl.pallas_call(
        kernel,
        out_shape=jax.ShapeDtypeStruct((B, N, dim), x.dtype),
        grid=(B // bt,),
        in_specs=[
            pl.BlockSpec((bt, N, dim), lambda i: (i, 0, 0)),      # x
            pl.BlockSpec((bt, N, N), lambda i: (i, 0, 0)),        # additive mask
            pl.BlockSpec((dim, 3 * inner), lambda i: (0, 0)),     # Wqkv slab
            pl.BlockSpec((inner, dim), lambda i: (0, 0)),         # Wout slab
            pl.BlockSpec((1, dim), lambda i: (0, 0)),             # output bias
        ],
        out_specs=pl.BlockSpec((bt, N, dim), lambda i: (i, 0, 0)),
        compiler_params=pltpu.CompilerParams(
            dimension_semantics=("parallel",),
        ),
    )(x, bias, wqkv, wout, b2)


def _reference(x, attn_mask, w_qkv, w_out, b_out, heads, dim_head):
    """Pure-JAX mirror of the PyTorch forward."""
    B, N, dim = x.shape
    inner = heads * dim_head
    scale = float(dim_head) ** -0.5
    qkv = x @ w_qkv.T                                    # (B, N, 3*inner)
    q, k, v = jnp.split(qkv, 3, axis=-1)

    def split_heads(t):
        return jnp.transpose(t.reshape(B, N, heads, dim_head), (0, 2, 1, 3))

    q, k, v = split_heads(q), split_heads(k), split_heads(v)
    dots = jnp.einsum("bhid,bhjd->bhij", q, k) * scale
    dots = jnp.where(attn_mask[:, None, :, :], jnp.float32(-1e9), dots)
    attn = jax.nn.softmax(dots, axis=-1)
    out = jnp.einsum("bhij,bhjd->bhid", attn, v)
    out = jnp.transpose(out, (0, 2, 1, 3)).reshape(B, N, inner)
    return out @ w_out.T + b_out


if __name__ == "__main__":
    key = jax.random.PRNGKey(0)
    B, N, dim = 2, 8, 32
    heads, dim_head = 8, 32
    inner = heads * dim_head

    k_x, k_qkv, k_out, k_b, k_m = jax.random.split(key, 5)
    x = jax.random.normal(k_x, (B, N, dim), jnp.float32)
    w_qkv = jax.random.normal(k_qkv, (3 * inner, dim), jnp.float32) * 0.05
    w_out = jax.random.normal(k_out, (dim, inner), jnp.float32) * 0.05
    b_out = jax.random.normal(k_b, (dim,), jnp.float32) * 0.05
    attn_mask = jax.random.bernoulli(k_m, 0.3, (B, N, N))
    # keep the diagonal unmasked so every row attends to at least one key
    attn_mask = jnp.logical_and(attn_mask, ~jnp.eye(N, dtype=bool)[None])

    y = mask_attention(x, attn_mask, w_qkv, w_out, b_out,
                       heads=heads, dim_head=dim_head)
    jax.block_until_ready(y)

    y_ref = _reference(x, attn_mask, w_qkv, w_out, b_out, heads, dim_head)
    assert y.shape == (B, N, dim)
    max_err = float(jnp.max(jnp.abs(y - y_ref)))
    assert jnp.allclose(y, y_ref, atol=2e-3, rtol=2e-3), f"max_err={max_err}"

    print("KERNEL_OK")
</pallas_src>

<mosaic_0001>
module attributes {stable_mosaic.version = 11 : i64} {
  func.func @_mask_attention_kernel(%arg0: i32, %arg1: memref<1x8x32xf32, #tpu.memory_space<vmem>>, %arg2: memref<1x8x8xbf16, #tpu.memory_space<vmem>>, %arg3: memref<32x768xf32, #tpu.memory_space<vmem>>, %arg4: memref<256x32xf32, #tpu.memory_space<vmem>>, %arg5: memref<1x32xf32, #tpu.memory_space<vmem>>, %arg6: memref<1x8x32xf32, #tpu.memory_space<vmem>>) attributes {dimension_semantics = [#tpu.dimension_semantics<parallel>], iteration_bounds = array<i64: 2>, scalar_prefetch = 0 : i64, scratch_operands = 0 : i64, tpu.core_type = #tpu.core_type<tc>, window_params = [{transform_indices = @transform_0, window_bounds = array<i64: 1, 8, 32>}, {transform_indices = @transform_1, window_bounds = array<i64: 1, 8, 8>}, {pipeline_mode = #tpu.pipeline_mode<synchronous>, transform_indices = @transform_2, window_bounds = array<i64: 32, 768>}, {pipeline_mode = #tpu.pipeline_mode<synchronous>, transform_indices = @transform_3, window_bounds = array<i64: 256, 32>}, {pipeline_mode = #tpu.pipeline_mode<synchronous>, transform_indices = @transform_4, window_bounds = array<i64: 1, 32>}, {transform_indices = @transform_5, window_bounds = array<i64: 1, 8, 32>}]} {
    %c0 = arith.constant 0 : index
    %c0_0 = arith.constant 0 : index
    %c0_1 = arith.constant 0 : index
    %0 = vector.load %arg1[%c0, %c0_0, %c0_1] : memref<1x8x32xf32, #tpu.memory_space<vmem>>, vector<1x8x32xf32>
    %1 = vector.shape_cast %0 : vector<1x8x32xf32> to vector<8x32xf32>
    %c0_2 = arith.constant 0 : index
    %c0_3 = arith.constant 0 : index
    %2 = vector.load %arg3[%c0_2, %c0_3] : memref<32x768xf32, #tpu.memory_space<vmem>>, vector<32x768xf32>
    %cst = arith.constant dense<0.000000e+00> : vector<8x768xf32>
    %3 = tpu.matmul %1, %2, %cst {dimension_numbers = #tpu.dot_dimension_numbers<[1], [0], [0], [1], [0, 0, 1, 1], [], []>} : vector<8x32xf32>, vector<32x768xf32>, vector<8x768xf32> -> vector<8x768xf32>
    %4 = vector.shape_cast %3 : vector<8x768xf32> to vector<1x8x768xf32>
    %c0_4 = arith.constant 0 : index
    %c0_5 = arith.constant 0 : index
    %c0_6 = arith.constant 0 : index
    %5 = vector.load %arg2[%c0_4, %c0_5, %c0_6] : memref<1x8x8xbf16, #tpu.memory_space<vmem>>, vector<1x8x8xbf16>
    %6 = arith.extf %5 : vector<1x8x8xbf16> to vector<1x8x8xf32>
    %7 = vector.extract_strided_slice %4 {offsets = [0, 0, 0], sizes = [1, 8, 32], strides = [1, 1, 1]} : vector<1x8x768xf32> to vector<1x8x32xf32>
    %8 = vector.extract_strided_slice %4 {offsets = [0, 0, 256], sizes = [1, 8, 32], strides = [1, 1, 1]} : vector<1x8x768xf32> to vector<1x8x32xf32>
    %9 = vector.extract_strided_slice %4 {offsets = [0, 0, 512], sizes = [1, 8, 32], strides = [1, 1, 1]} : vector<1x8x768xf32> to vector<1x8x32xf32>
    "tpu.trace_start"() <{level = 10 : i32, message = "bnd,bmd->bnm"}> : () -> ()
    %cst_7 = arith.constant dense<0.000000e+00> : vector<1x8x8xf32>
    %10 = tpu.matmul %7, %8, %cst_7 {dimension_numbers = #tpu.dot_dimension_numbers<[2], [2], [1], [1], [0, 0, 0, 1, 1, 1], [0], [0]>} : vector<1x8x32xf32>, vector<1x8x32xf32>, vector<1x8x8xf32> -> vector<1x8x8xf32>
    "tpu.trace_stop"() : () -> ()
    %cst_8 = arith.constant 0.176776692 : f32
    %11 = vector.broadcast %cst_8 : f32 to vector<1x8x8xf32>
    %12 = arith.mulf %10, %11 : vector<1x8x8xf32>
    %13 = arith.addf %12, %6 : vector<1x8x8xf32>
    %cst_9 = arith.constant dense<0xFF800000> : vector<1x8xf32>
    %14 = vector.multi_reduction <maximumf>, %13, %cst_9 [2] : vector<1x8x8xf32> to vector<1x8xf32>
    %15 = vector.shape_cast %14 : vector<1x8xf32> to vector<1x8x1xf32>
    %16 = vector.broadcast %15 : vector<1x8x1xf32> to vector<1x8x8xf32>
    %17 = arith.subf %13, %16 : vector<1x8x8xf32>
    %18 = math.exp %17 : vector<1x8x8xf32>
    %cst_10 = arith.constant dense<0.000000e+00> : vector<1x8xf32>
    %19 = vector.multi_reduction <add>, %18, %cst_10 [2] : vector<1x8x8xf32> to vector<1x8xf32>
    %20 = vector.shape_cast %19 : vector<1x8xf32> to vector<1x8x1xf32>
    %21 = tpu.reciprocal %20 {approx = true} : vector<1x8x1xf32> -> vector<1x8x1xf32>
    "tpu.trace_start"() <{level = 10 : i32, message = "bnm,bmd->bnd"}> : () -> ()
    %cst_11 = arith.constant dense<0.000000e+00> : vector<1x8x32xf32>
    %22 = tpu.matmul %18, %9, %cst_11 {dimension_numbers = #tpu.dot_dimension_numbers<[2], [1], [1], [2], [0, 0, 0, 1, 1, 2], [0], [0]>} : vector<1x8x8xf32>, vector<1x8x32xf32>, vector<1x8x32xf32> -> vector<1x8x32xf32>
    "tpu.trace_stop"() : () -> ()
    %23 = vector.broadcast %21 : vector<1x8x1xf32> to vector<1x8x32xf32>
    %24 = arith.mulf %22, %23 : vector<1x8x32xf32>
    %25 = vector.extract_strided_slice %4 {offsets = [0, 0, 32], sizes = [1, 8, 32], strides = [1, 1, 1]} : vector<1x8x768xf32> to vector<1x8x32xf32>
    %26 = vector.extract_strided_slice %4 {offsets = [0, 0, 288], sizes = [1, 8, 32], strides = [1, 1, 1]} : vector<1x8x768xf32> to vector<1x8x32xf32>
    %27 = vector.extract_strided_slice %4 {offsets = [0, 0, 544], sizes = [1, 8, 32], strides = [1, 1, 1]} : vector<1x8x768xf32> to vector<1x8x32xf32>
    "tpu.trace_start"() <{level = 10 : i32, message = "bnd,bmd->bnm"}> : () -> ()
    %cst_12 = arith.constant dense<0.000000e+00> : vector<1x8x8xf32>
    %28 = tpu.matmul %25, %26, %cst_12 {dimension_numbers = #tpu.dot_dimension_numbers<[2], [2], [1], [1], [0, 0, 0, 1, 1, 1], [0], [0]>} : vector<1x8x32xf32>, vector<1x8x32xf32>, vector<1x8x8xf32> -> vector<1x8x8xf32>
    "tpu.trace_stop"() : () -> ()
    %cst_13 = arith.constant 0.176776692 : f32
    %29 = vector.broadcast %cst_13 : f32 to vector<1x8x8xf32>
    %30 = arith.mulf %28, %29 : vector<1x8x8xf32>
    %31 = arith.addf %30, %6 : vector<1x8x8xf32>
    %cst_14 = arith.constant dense<0xFF800000> : vector<1x8xf32>
    %32 = vector.multi_reduction <maximumf>, %31, %cst_14 [2] : vector<1x8x8xf32> to vector<1x8xf32>
    %33 = vector.shape_cast %32 : vector<1x8xf32> to vector<1x8x1xf32>
    %34 = vector.broadcast %33 : vector<1x8x1xf32> to vector<1x8x8xf32>
    %35 = arith.subf %31, %34 : vector<1x8x8xf32>
    %36 = math.exp %35 : vector<1x8x8xf32>
    %cst_15 = arith.constant dense<0.000000e+00> : vector<1x8xf32>
    %37 = vector.multi_reduction <add>, %36, %cst_15 [2] : vector<1x8x8xf32> to vector<1x8xf32>
    %38 = vector.shape_cast %37 : vector<1x8xf32> to vector<1x8x1xf32>
    %39 = tpu.reciprocal %38 {approx = true} : vector<1x8x1xf32> -> vector<1x8x1xf32>
    "tpu.trace_start"() <{level = 10 : i32, message = "bnm,bmd->bnd"}> : () -> ()
    %cst_16 = arith.constant dense<0.000000e+00> : vector<1x8x32xf32>
    %40 = tpu.matmul %36, %27, %cst_16 {dimension_numbers = #tpu.dot_dimension_numbers<[2], [1], [1], [2], [0, 0, 0, 1, 1, 2], [0], [0]>} : vector<1x8x8xf32>, vector<1x8x32xf32>, vector<1x8x32xf32> -> vector<1x8x32xf32>
    "tpu.trace_stop"() : () -> ()
    %41 = vector.broadcast %39 : vector<1x8x1xf32> to vector<1x8x32xf32>
    %42 = arith.mulf %40, %41 : vector<1x8x32xf32>
    %43 = vector.extract_strided_slice %4 {offsets = [0, 0, 64], sizes = [1, 8, 32], strides = [1, 1, 1]} : vector<1x8x768xf32> to vector<1x8x32xf32>
    %44 = vector.extract_strided_slice %4 {offsets = [0, 0, 320], sizes = [1, 8, 32], strides = [1, 1, 1]} : vector<1x8x768xf32> to vector<1x8x32xf32>
    %45 = vector.extract_strided_slice %4 {offsets = [0, 0, 576], sizes = [1, 8, 32], strides = [1, 1, 1]} : vector<1x8x768xf32> to vector<1x8x32xf32>
    "tpu.trace_start"() <{level = 10 : i32, message = "bnd,bmd->bnm"}> : () -> ()
    %cst_17 = arith.constant dense<0.000000e+00> : vector<1x8x8xf32>
    %46 = tpu.matmul %43, %44, %cst_17 {dimension_numbers = #tpu.dot_dimension_numbers<[2], [2], [1], [1], [0, 0, 0, 1, 1, 1], [0], [0]>} : vector<1x8x32xf32>, vector<1x8x32xf32>, vector<1x8x8xf32> -> vector<1x8x8xf32>
    "tpu.trace_stop"() : () -> ()
    %cst_18 = arith.constant 0.176776692 : f32
    %47 = vector.broadcast %cst_18 : f32 to vector<1x8x8xf32>
    %48 = arith.mulf %46, %47 : vector<1x8x8xf32>
    %49 = arith.addf %48, %6 : vector<1x8x8xf32>
    %cst_19 = arith.constant dense<0xFF800000> : vector<1x8xf32>
    %50 = vector.multi_reduction <maximumf>, %49, %cst_19 [2] : vector<1x8x8xf32> to vector<1x8xf32>
    %51 = vector.shape_cast %50 : vector<1x8xf32> to vector<1x8x1xf32>
    %52 = vector.broadcast %51 : vector<1x8x1xf32> to vector<1x8x8xf32>
    %53 = arith.subf %49, %52 : vector<1x8x8xf32>
    %54 = math.exp %53 : vector<1x8x8xf32>
    %cst_20 = arith.constant dense<0.000000e+00> : vector<1x8xf32>
    %55 = vector.multi_reduction <add>, %54, %cst_20 [2] : vector<1x8x8xf32> to vector<1x8xf32>
    %56 = vector.shape_cast %55 : vector<1x8xf32> to vector<1x8x1xf32>
    %57 = tpu.reciprocal %56 {approx = true} : vector<1x8x1xf32> -> vector<1x8x1xf32>
    "tpu.trace_start"() <{level = 10 : i32, message = "bnm,bmd->bnd"}> : () -> ()
    %cst_21 = arith.constant dense<0.000000e+00> : vector<1x8x32xf32>
    %58 = tpu.matmul %54, %45, %cst_21 {dimension_numbers = #tpu.dot_dimension_numbers<[2], [1], [1], [2], [0, 0, 0, 1, 1, 2], [0], [0]>} : vector<1x8x8xf32>, vector<1x8x32xf32>, vector<1x8x32xf32> -> vector<1x8x32xf32>
    "tpu.trace_stop"() : () -> ()
    %59 = vector.broadcast %57 : vector<1x8x1xf32> to vector<1x8x32xf32>
    %60 = arith.mulf %58, %59 : vector<1x8x32xf32>
    %61 = vector.extract_strided_slice %4 {offsets = [0, 0, 96], sizes = [1, 8, 32], strides = [1, 1, 1]} : vector<1x8x768xf32> to vector<1x8x32xf32>
    %62 = vector.extract_strided_slice %4 {offsets = [0, 0, 352], sizes = [1, 8, 32], strides = [1, 1, 1]} : vector<1x8x768xf32> to vector<1x8x32xf32>
    %63 = vector.extract_strided_slice %4 {offsets = [0, 0, 608], sizes = [1, 8, 32], strides = [1, 1, 1]} : vector<1x8x768xf32> to vector<1x8x32xf32>
    "tpu.trace_start"() <{level = 10 : i32, message = "bnd,bmd->bnm"}> : () -> ()
    %cst_22 = arith.constant dense<0.000000e+00> : vector<1x8x8xf32>
    %64 = tpu.matmul %61, %62, %cst_22 {dimension_numbers = #tpu.dot_dimension_numbers<[2], [2], [1], [1], [0, 0, 0, 1, 1, 1], [0], [0]>} : vector<1x8x32xf32>, vector<1x8x32xf32>, vector<1x8x8xf32> -> vector<1x8x8xf32>
    "tpu.trace_stop"() : () -> ()
    %cst_23 = arith.constant 0.176776692 : f32
    %65 = vector.broadcast %cst_23 : f32 to vector<1x8x8xf32>
    %66 = arith.mulf %64, %65 : vector<1x8x8xf32>
    %67 = arith.addf %66, %6 : vector<1x8x8xf32>
    %cst_24 = arith.constant dense<0xFF800000> : vector<1x8xf32>
    %68 = vector.multi_reduction <maximumf>, %67, %cst_24 [2] : vector<1x8x8xf32> to vector<1x8xf32>
    %69 = vector.shape_cast %68 : vector<1x8xf32> to vector<1x8x1xf32>
    %70 = vector.broadcast %69 : vector<1x8x1xf32> to vector<1x8x8xf32>
    %71 = arith.subf %67, %70 : vector<1x8x8xf32>
    %72 = math.exp %71 : vector<1x8x8xf32>
    %cst_25 = arith.constant dense<0.000000e+00> : vector<1x8xf32>
    %73 = vector.multi_reduction <add>, %72, %cst_25 [2] : vector<1x8x8xf32> to vector<1x8xf32>
    %74 = vector.shape_cast %73 : vector<1x8xf32> to vector<1x8x1xf32>
    %75 = tpu.reciprocal %74 {approx = true} : vector<1x8x1xf32> -> vector<1x8x1xf32>
    "tpu.trace_start"() <{level = 10 : i32, message = "bnm,bmd->bnd"}> : () -> ()
    %cst_26 = arith.constant dense<0.000000e+00> : vector<1x8x32xf32>
    %76 = tpu.matmul %72, %63, %cst_26 {dimension_numbers = #tpu.dot_dimension_numbers<[2], [1], [1], [2], [0, 0, 0, 1, 1, 2], [0], [0]>} : vector<1x8x8xf32>, vector<1x8x32xf32>, vector<1x8x32xf32> -> vector<1x8x32xf32>
    "tpu.trace_stop"() : () -> ()
    %77 = vector.broadcast %75 : vector<1x8x1xf32> to vector<1x8x32xf32>
    %78 = arith.mulf %76, %77 : vector<1x8x32xf32>
    %79 = vector.extract_strided_slice %4 {offsets = [0, 0, 128], sizes = [1, 8, 32], strides = [1, 1, 1]} : vector<1x8x768xf32> to vector<1x8x32xf32>
    %80 = vector.extract_strided_slice %4 {offsets = [0, 0, 384], sizes = [1, 8, 32], strides = [1, 1, 1]} : vector<1x8x768xf32> to vector<1x8x32xf32>
    %81 = vector.extract_strided_slice %4 {offsets = [0, 0, 640], sizes = [1, 8, 32], strides = [1, 1, 1]} : vector<1x8x768xf32> to vector<1x8x32xf32>
    "tpu.trace_start"() <{level = 10 : i32, message = "bnd,bmd->bnm"}> : () -> ()
    %cst_27 = arith.constant dense<0.000000e+00> : vector<1x8x8xf32>
    %82 = tpu.matmul %79, %80, %cst_27 {dimension_numbers = #tpu.dot_dimension_numbers<[2], [2], [1], [1], [0, 0, 0, 1, 1, 1], [0], [0]>} : vector<1x8x32xf32>, vector<1x8x32xf32>, vector<1x8x8xf32> -> vector<1x8x8xf32>
    "tpu.trace_stop"() : () -> ()
    %cst_28 = arith.constant 0.176776692 : f32
    %83 = vector.broadcast %cst_28 : f32 to vector<1x8x8xf32>
    %84 = arith.mulf %82, %83 : vector<1x8x8xf32>
    %85 = arith.addf %84, %6 : vector<1x8x8xf32>
    %cst_29 = arith.constant dense<0xFF800000> : vector<1x8xf32>
    %86 = vector.multi_reduction <maximumf>, %85, %cst_29 [2] : vector<1x8x8xf32> to vector<1x8xf32>
    %87 = vector.shape_cast %86 : vector<1x8xf32> to vector<1x8x1xf32>
    %88 = vector.broadcast %87 : vector<1x8x1xf32> to vector<1x8x8xf32>
    %89 = arith.subf %85, %88 : vector<1x8x8xf32>
    %90 = math.exp %89 : vector<1x8x8xf32>
    %cst_30 = arith.constant dense<0.000000e+00> : vector<1x8xf32>
    %91 = vector.multi_reduction <add>, %90, %cst_30 [2] : vector<1x8x8xf32> to vector<1x8xf32>
    %92 = vector.shape_cast %91 : vector<1x8xf32> to vector<1x8x1xf32>
    %93 = tpu.reciprocal %92 {approx = true} : vector<1x8x1xf32> -> vector<1x8x1xf32>
    "tpu.trace_start"() <{level = 10 : i32, message = "bnm,bmd->bnd"}> : () -> ()
    %cst_31 = arith.constant dense<0.000000e+00> : vector<1x8x32xf32>
    %94 = tpu.matmul %90, %81, %cst_31 {dimension_numbers = #tpu.dot_dimension_numbers<[2], [1], [1], [2], [0, 0, 0, 1, 1, 2], [0], [0]>} : vector<1x8x8xf32>, vector<1x8x32xf32>, vector<1x8x32xf32> -> vector<1x8x32xf32>
    "tpu.trace_stop"() : () -> ()
    %95 = vector.broadcast %93 : vector<1x8x1xf32> to vector<1x8x32xf32>
    %96 = arith.mulf %94, %95 : vector<1x8x32xf32>
    %97 = vector.extract_strided_slice %4 {offsets = [0, 0, 160], sizes = [1, 8, 32], strides = [1, 1, 1]} : vector<1x8x768xf32> to vector<1x8x32xf32>
    %98 = vector.extract_strided_slice %4 {offsets = [0, 0, 416], sizes = [1, 8, 32], strides = [1, 1, 1]} : vector<1x8x768xf32> to vector<1x8x32xf32>
    %99 = vector.extract_strided_slice %4 {offsets = [0, 0, 672], sizes = [1, 8, 32], strides = [1, 1, 1]} : vector<1x8x768xf32> to vector<1x8x32xf32>
    "tpu.trace_start"() <{level = 10 : i32, message = "bnd,bmd->bnm"}> : () -> ()
    %cst_32 = arith.constant dense<0.000000e+00> : vector<1x8x8xf32>
    %100 = tpu.matmul %97, %98, %cst_32 {dimension_numbers = #tpu.dot_dimension_numbers<[2], [2], [1], [1], [0, 0, 0, 1, 1, 1], [0], [0]>} : vector<1x8x32xf32>, vector<1x8x32xf32>, vector<1x8x8xf32> -> vector<1x8x8xf32>
    "tpu.trace_stop"() : () -> ()
    %cst_33 = arith.constant 0.176776692 : f32
    %101 = vector.broadcast %cst_33 : f32 to vector<1x8x8xf32>
    %102 = arith.mulf %100, %101 : vector<1x8x8xf32>
    %103 = arith.addf %102, %6 : vector<1x8x8xf32>
    %cst_34 = arith.constant dense<0xFF800000> : vector<1x8xf32>
    %104 = vector.multi_reduction <maximumf>, %103, %cst_34 [2] : vector<1x8x8xf32> to vector<1x8xf32>
    %105 = vector.shape_cast %104 : vector<1x8xf32> to vector<1x8x1xf32>
    %106 = vector.broadcast %105 : vector<1x8x1xf32> to vector<1x8x8xf32>
    %107 = arith.subf %103, %106 : vector<1x8x8xf32>
    %108 = math.exp %107 : vector<1x8x8xf32>
    %cst_35 = arith.constant dense<0.000000e+00> : vector<1x8xf32>
    %109 = vector.multi_reduction <add>, %108, %cst_35 [2] : vector<1x8x8xf32> to vector<1x8xf32>
    %110 = vector.shape_cast %109 : vector<1x8xf32> to vector<1x8x1xf32>
    %111 = tpu.reciprocal %110 {approx = true} : vector<1x8x1xf32> -> vector<1x8x1xf32>
    "tpu.trace_start"() <{level = 10 : i32, message = "bnm,bmd->bnd"}> : () -> ()
    %cst_36 = arith.constant dense<0.000000e+00> : vector<1x8x32xf32>
    %112 = tpu.matmul %108, %99, %cst_36 {dimension_numbers = #tpu.dot_dimension_numbers<[2], [1], [1], [2], [0, 0, 0, 1, 1, 2], [0], [0]>} : vector<1x8x8xf32>, vector<1x8x32xf32>, vector<1x8x32xf32> -> vector<1x8x32xf32>
    "tpu.trace_stop"() : () -> ()
    %113 = vector.broadcast %111 : vector<1x8x1xf32> to vector<1x8x32xf32>
    %114 = arith.mulf %112, %113 : vector<1x8x32xf32>
    %115 = vector.extract_strided_slice %4 {offsets = [0, 0, 192], sizes = [1, 8, 32], strides = [1, 1, 1]} : vector<1x8x768xf32> to vector<1x8x32xf32>
    %116 = vector.extract_strided_slice %4 {offsets = [0, 0, 448], sizes = [1, 8, 32], strides = [1, 1, 1]} : vector<1x8x768xf32> to vector<1x8x32xf32>
    %117 = vector.extract_strided_slice %4 {offsets = [0, 0, 704], sizes = [1, 8, 32], strides = [1, 1, 1]} : vector<1x8x768xf32> to vector<1x8x32xf32>
    "tpu.trace_start"() <{level = 10 : i32, message = "bnd,bmd->bnm"}> : () -> ()
    %cst_37 = arith.constant dense<0.000000e+00> : vector<1x8x8xf32>
    %118 = tpu.matmul %115, %116, %cst_37 {dimension_numbers = #tpu.dot_dimension_numbers<[2], [2], [1], [1], [0, 0, 0, 1, 1, 1], [0], [0]>} : vector<1x8x32xf32>, vector<1x8x32xf32>, vector<1x8x8xf32> -> vector<1x8x8xf32>
    "tpu.trace_stop"() : () -> ()
    %cst_38 = arith.constant 0.176776692 : f32
    %119 = vector.broadcast %cst_38 : f32 to vector<1x8x8xf32>
    %120 = arith.mulf %118, %119 : vector<1x8x8xf32>
    %121 = arith.addf %120, %6 : vector<1x8x8xf32>
    %cst_39 = arith.constant dense<0xFF800000> : vector<1x8xf32>
    %122 = vector.multi_reduction <maximumf>, %121, %cst_39 [2] : vector<1x8x8xf32> to vector<1x8xf32>
    %123 = vector.shape_cast %122 : vector<1x8xf32> to vector<1x8x1xf32>
    %124 = vector.broadcast %123 : vector<1x8x1xf32> to vector<1x8x8xf32>
    %125 = arith.subf %121, %124 : vector<1x8x8xf32>
    %126 = math.exp %125 : vector<1x8x8xf32>
    %cst_40 = arith.constant dense<0.000000e+00> : vector<1x8xf32>
    %127 = vector.multi_reduction <add>, %126, %cst_40 [2] : vector<1x8x8xf32> to vector<1x8xf32>
    %128 = vector.shape_cast %127 : vector<1x8xf32> to vector<1x8x1xf32>
    %129 = tpu.reciprocal %128 {approx = true} : vector<1x8x1xf32> -> vector<1x8x1xf32>
    "tpu.trace_start"() <{level = 10 : i32, message = "bnm,bmd->bnd"}> : () -> ()
    %cst_41 = arith.constant dense<0.000000e+00> : vector<1x8x32xf32>
    %130 = tpu.matmul %126, %117, %cst_41 {dimension_numbers = #tpu.dot_dimension_numbers<[2], [1], [1], [2], [0, 0, 0, 1, 1, 2], [0], [0]>} : vector<1x8x8xf32>, vector<1x8x32xf32>, vector<1x8x32xf32> -> vector<1x8x32xf32>
    "tpu.trace_stop"() : () -> ()
    %131 = vector.broadcast %129 : vector<1x8x1xf32> to vector<1x8x32xf32>
    %132 = arith.mulf %130, %131 : vector<1x8x32xf32>
    %133 = vector.extract_strided_slice %4 {offsets = [0, 0, 224], sizes = [1, 8, 32], strides = [1, 1, 1]} : vector<1x8x768xf32> to vector<1x8x32xf32>
    %134 = vector.extract_strided_slice %4 {offsets = [0, 0, 480], sizes = [1, 8, 32], strides = [1, 1, 1]} : vector<1x8x768xf32> to vector<1x8x32xf32>
    %135 = vector.extract_strided_slice %4 {offsets = [0, 0, 736], sizes = [1, 8, 32], strides = [1, 1, 1]} : vector<1x8x768xf32> to vector<1x8x32xf32>
    "tpu.trace_start"() <{level = 10 : i32, message = "bnd,bmd->bnm"}> : () -> ()
    %cst_42 = arith.constant dense<0.000000e+00> : vector<1x8x8xf32>
    %136 = tpu.matmul %133, %134, %cst_42 {dimension_numbers = #tpu.dot_dimension_numbers<[2], [2], [1], [1], [0, 0, 0, 1, 1, 1], [0], [0]>} : vector<1x8x32xf32>, vector<1x8x32xf32>, vector<1x8x8xf32> -> vector<1x8x8xf32>
    "tpu.trace_stop"() : () -> ()
    %cst_43 = arith.constant 0.176776692 : f32
    %137 = vector.broadcast %cst_43 : f32 to vector<1x8x8xf32>
    %138 = arith.mulf %136, %137 : vector<1x8x8xf32>
    %139 = arith.addf %138, %6 : vector<1x8x8xf32>
    %cst_44 = arith.constant dense<0xFF800000> : vector<1x8xf32>
    %140 = vector.multi_reduction <maximumf>, %139, %cst_44 [2] : vector<1x8x8xf32> to vector<1x8xf32>
    %141 = vector.shape_cast %140 : vector<1x8xf32> to vector<1x8x1xf32>
    %142 = vector.broadcast %141 : vector<1x8x1xf32> to vector<1x8x8xf32>
    %143 = arith.subf %139, %142 : vector<1x8x8xf32>
    %144 = math.exp %143 : vector<1x8x8xf32>
    %cst_45 = arith.constant dense<0.000000e+00> : vector<1x8xf32>
    %145 = vector.multi_reduction <add>, %144, %cst_45 [2] : vector<1x8x8xf32> to vector<1x8xf32>
    %146 = vector.shape_cast %145 : vector<1x8xf32> to vector<1x8x1xf32>
    %147 = tpu.reciprocal %146 {approx = true} : vector<1x8x1xf32> -> vector<1x8x1xf32>
    "tpu.trace_start"() <{level = 10 : i32, message = "bnm,bmd->bnd"}> : () -> ()
    %cst_46 = arith.constant dense<0.000000e+00> : vector<1x8x32xf32>
    %148 = tpu.matmul %144, %135, %cst_46 {dimension_numbers = #tpu.dot_dimension_numbers<[2], [1], [1], [2], [0, 0, 0, 1, 1, 2], [0], [0]>} : vector<1x8x8xf32>, vector<1x8x32xf32>, vector<1x8x32xf32> -> vector<1x8x32xf32>
    "tpu.trace_stop"() : () -> ()
    %149 = vector.broadcast %147 : vector<1x8x1xf32> to vector<1x8x32xf32>
    %150 = arith.mulf %148, %149 : vector<1x8x32xf32>
    %151 = tpu.concatenate %24, %42, %60, %78, %96, %114, %132, %150 in 2 : vector<1x8x32xf32>, vector<1x8x32xf32>, vector<1x8x32xf32>, vector<1x8x32xf32>, vector<1x8x32xf32>, vector<1x8x32xf32>, vector<1x8x32xf32>, vector<1x8x32xf32> -> vector<1x8x256xf32>
    %152 = vector.shape_cast %151 : vector<1x8x256xf32> to vector<8x256xf32>
    %c0_47 = arith.constant 0 : index
    %c0_48 = arith.constant 0 : index
    %153 = vector.load %arg4[%c0_47, %c0_48] : memref<256x32xf32, #tpu.memory_space<vmem>>, vector<256x32xf32>
    %cst_49 = arith.constant dense<0.000000e+00> : vector<8x32xf32>
    %154 = tpu.matmul %152, %153, %cst_49 {dimension_numbers = #tpu.dot_dimension_numbers<[1], [0], [0], [1], [0, 0, 1, 1], [], []>} : vector<8x256xf32>, vector<256x32xf32>, vector<8x32xf32> -> vector<8x32xf32>
    %c0_50 = arith.constant 0 : index
    %c0_51 = arith.constant 0 : index
    %155 = vector.load %arg5[%c0_50, %c0_51] : memref<1x32xf32, #tpu.memory_space<vmem>>, vector<1x32xf32>
    %156 = vector.broadcast %155 : vector<1x32xf32> to vector<8x32xf32>
    %157 = arith.addf %154, %156 : vector<8x32xf32>
    %158 = vector.shape_cast %157 : vector<8x32xf32> to vector<1x8x32xf32>
    %c0_52 = arith.constant 0 : index
    %c0_53 = arith.constant 0 : index
    %c0_54 = arith.constant 0 : index
    %159 = vector.load %arg6[%c0_52, %c0_53, %c0_54] : memref<1x8x32xf32, #tpu.memory_space<vmem>>, vector<1x8x32xf32>
    tpu.vector_store %arg6[%c0_52, %c0_53, %c0_54], %158 {strides = array<i32>} : memref<1x8x32xf32, #tpu.memory_space<vmem>>, vector<1x8x32xf32>,
    return
  }
  func.func @transform_0(%arg0: i32) -> (i32, i32, i32) {
    %c0_i32 = arith.constant 0 : i32
    %c0_i32_0 = arith.constant 0 : i32
    %c0_i32_1 = arith.constant 0 : i32
    return %arg0, %c0_i32, %c0_i32_0 : i32, i32, i32
  }
  func.func @transform_1(%arg0: i32) -> (i32, i32, i32) {
    %c0_i32 = arith.constant 0 : i32
    %c0_i32_0 = arith.constant 0 : i32
    %c0_i32_1 = arith.constant 0 : i32
    return %arg0, %c0_i32, %c0_i32_0 : i32, i32, i32
  }
  func.func @transform_2(%arg0: i32) -> (i32, i32) {
    %c0_i32 = arith.constant 0 : i32
    %c0_i32_0 = arith.constant 0 : i32
    %c0_i32_1 = arith.constant 0 : i32
    return %c0_i32, %c0_i32_0 : i32, i32
  }
  func.func @transform_3(%arg0: i32) -> (i32, i32) {
    %c0_i32 = arith.constant 0 : i32
    %c0_i32_0 = arith.constant 0 : i32
    %c0_i32_1 = arith.constant 0 : i32
    return %c0_i32, %c0_i32_0 : i32, i32
  }
  func.func @transform_4(%arg0: i32) -> (i32, i32) {
    %c0_i32 = arith.constant 0 : i32
    %c0_i32_0 = arith.constant 0 : i32
    %c0_i32_1 = arith.constant 0 : i32
    return %c0_i32, %c0_i32_0 : i32, i32
  }
  func.func @transform_5(%arg0: i32) -> (i32, i32, i32) {
    %c0_i32 = arith.constant 0 : i32
    %c0_i32_0 = arith.constant 0 : i32
    %c0_i32_1 = arith.constant 0 : i32
    return %arg0, %c0_i32, %c0_i32_0 : i32, i32, i32
  }
}

</mosaic_0001>

<llo_original>
// kernel: tpu_custom_call.1
$region0: #{tpu_custom_call.1}
  #allocation0 [shape = 'u32[]', space=smem, size = 0x4, offset = 0x4, fixed_abs, tag = 'smem constant byte address 0x4 - core index']
  #allocation1 [shape = 'u32[144,128]{1,0:T(1,128)}', space=vmem, size = 0x12000, scoped, tag = 'internal scratch']
  %s0 = inlined_call_operand.vmem [shape: f32[2,8,32], index: 0, kind: input, shape index: {}]
  %s1 = inlined_call_operand.vmem [shape: bf16[2,8,8], index: 1, kind: input, shape index: {}]
  %s2 = inlined_call_operand.vmem [shape: f32[32,768], index: 2, kind: input, shape index: {}]
  %s3 = inlined_call_operand.vmem [shape: f32[256,32], index: 3, kind: input, shape index: {}]
  %s4 = inlined_call_operand.vmem [shape: f32[1,32], index: 4, kind: input, shape index: {}]
  %s5 = inlined_call_operand.hbm [shape: f32[2,8,32], index: 5, kind: output, shape index: {}]
  %s6 = sld [smem:[#allocation0]]
  $region53: #{tpu_custom_call.1} parent=0
    _
  %s8 = ssub.s32 1, %s6
  %s9 = scalar_select 0, %s8, %s6
  $region1: #{tpu_custom_call.1} parent=0
    #allocation2 [shape = 'u8[8192]{0}', space=vmem, size = 0x2000, scoped, tag = 'output window, operand 0']
    #allocation3 [shape = 's32[2]{0}', space=sflag, size = 0x8, scoped, tag = 'scoped memory for tpu_custom_call.1']
    %10 = vsyncpa [#allocation3], 0
    %s11 = scalar_lea.sflag [#allocation3], 1
    %12 = vsyncpa %s11, 0
    loop: start=0, step=1, limit=4
    $region2: #{tpu_custom_call.1} parent=1 // loop_pre_header
      _
    $region3: #{tpu_custom_call.1} parent=1 // loop_header
      %s14 = sphi 0, %s18
      %p15 = scmp.ge.s32.totalorder %s14, 4
      %s24 = sphi 0, %s26
      %s27 = sphi 0, %s24
      %s28 = sphi 0, %s27
      %s44 = sphi 0, %s28
      %s50 = sphi 0, %s52
      %s53 = sphi 0, %s50
      %s54 = sphi 0, %s53
      %s70 = sphi 0, %s54
      %s74 = sphi 0, %s74
      %s76 = sphi 0, %s74
      %s77 = sphi 0, %s76
      %s91 = sphi 0, %s77
      %s95 = sphi 0, %s95
      %s97 = sphi 0, %s95
      %s98 = sphi 0, %s97
      %s112 = sphi 0, %s98
      %s116 = sphi 0, %s116
      %s118 = sphi 0, %s116
      %s119 = sphi 0, %s118
      %s133 = sphi 0, %s119
      %s139 = sphi 0, %s141
      %s142 = sphi 0, %s139
      %s143 = sphi 0, %s142
      %s159 = sphi 0, %s143
    $region4: #{tpu_custom_call.1} parent=1 // loop_header_branch
      %17 = sbr.rel (%p15) target = $region8
    $region5: #{tpu_custom_call.1} parent=1 // loop_body
      %s19 = ssub.s32 %s14, 1
      %s20 = ssub.s32 %s14, 2
      %s21 = sadd.s32 %s14, 1
      %s22 = ssub.s32 %s14, %s21
      %p23 = scmp.eq.s32.totalorder %s22, 0
      %s25 = sadd.s32 %s24, 1
      %s26 = scalar_select %p23, %s24, %s25
      %p29 = pneg %p23
      %p30 = scmp.eq.s32.totalorder %s14, 1
      %p31 = por %p29, %p30
      %p32 = scmp.ne.s32.totalorder %s24, %s27
      %p33 = scmp.eq.s32.totalorder %s14, 0
      %p34 = por %p32, %p33
      %p35 = scmp.ne.s32.totalorder %s24, %s27
      %p36 = scmp.eq.s32.totalorder %s19, 1
      %p37 = por %p35, %p36
      %p38 = scmp.ne.s32.totalorder %s27, %s28
      %p39 = scmp.eq.s32.totalorder %s19, 0
      %p40 = por %p38, %p39
      %p41 = scmp.ne.s32.totalorder %s27, %s28
      %p42 = scmp.eq.s32.totalorder %s20, 1
      %p43 = por %p41, %p42
      %p45 = scmp.ne.s32.totalorder %s28, %s44
      %p46 = scmp.eq.s32.totalorder %s20, 0
      %p47 = por %p45, %p46
      %s48 = ssub.s32 %s14, %s21
      %p49 = scmp.eq.s32.totalorder %s48, 0
      %s51 = sadd.s32 %s50, 1
      %s52 = scalar_select %p49, %s50, %s51
      %p55 = pneg %p49
      %p56 = scmp.eq.s32.totalorder %s14, 1
      %p57 = por %p55, %p56
      %p58 = scmp.ne.s32.totalorder %s50, %s53
      %p59 = scmp.eq.s32.totalorder %s14, 0
      %p60 = por %p58, %p59
      %p61 = scmp.ne.s32.totalorder %s50, %s53
      %p62 = scmp.eq.s32.totalorder %s19, 1
      %p63 = por %p61, %p62
      %p64 = scmp.ne.s32.totalorder %s53, %s54
      %p65 = scmp.eq.s32.totalorder %s19, 0
      %p66 = por %p64, %p65
      %p67 = scmp.ne.s32.totalorder %s53, %s54
      %p68 = scmp.eq.s32.totalorder %s20, 1
      %p69 = por %p67, %p68
      %p71 = scmp.ne.s32.totalorder %s54, %s70
      %p72 = scmp.eq.s32.totalorder %s20, 0
      %p73 = por %p71, %p72
      %s75 = sadd.s32 %s74, 1
      %p78 = scmp.eq.s32.totalorder %s14, 1
      %p79 = scmp.ne.s32.totalorder %s74, %s76
      %p80 = scmp.eq.s32.totalorder %s14, 0
      %p81 = por %p79, %p80
      %p82 = scmp.ne.s32.totalorder %s74, %s76
      %p83 = scmp.eq.s32.totalorder %s19, 1
      %p84 = por %p82, %p83
      %p85 = scmp.ne.s32.totalorder %s76, %s77
      %p86 = scmp.eq.s32.totalorder %s19, 0
      %p87 = por %p85, %p86
      %p88 = scmp.ne.s32.totalorder %s76, %s77
      %p89 = scmp.eq.s32.totalorder %s20, 1
      %p90 = por %p88, %p89
      %p92 = scmp.ne.s32.totalorder %s77, %s91
      %p93 = scmp.eq.s32.totalorder %s20, 0
      %p94 = por %p92, %p93
      %s96 = sadd.s32 %s95, 1
      %p99 = scmp.eq.s32.totalorder %s14, 1
      %p100 = scmp.ne.s32.totalorder %s95, %s97
      %p101 = scmp.eq.s32.totalorder %s14, 0
      %p102 = por %p100, %p101
      %p103 = scmp.ne.s32.totalorder %s95, %s97
      %p104 = scmp.eq.s32.totalorder %s19, 1
      %p105 = por %p103, %p104
      %p106 = scmp.ne.s32.totalorder %s97, %s98
      %p107 = scmp.eq.s32.totalorder %s19, 0
      %p108 = por %p106, %p107
      %p109 = scmp.ne.s32.totalorder %s97, %s98
      %p110 = scmp.eq.s32.totalorder %s20, 1
      %p111 = por %p109, %p110
      %p113 = scmp.ne.s32.totalorder %s98, %s112
      %p114 = scmp.eq.s32.totalorder %s20, 0
      %p115 = por %p113, %p114
      %s117 = sadd.s32 %s116, 1
      %p120 = scmp.eq.s32.totalorder %s14, 1
      %p121 = scmp.ne.s32.totalorder %s116, %s118
      %p122 = scmp.eq.s32.totalorder %s14, 0
      %p123 = por %p121, %p122
      %p124 = scmp.ne.s32.totalorder %s116, %s118
      %p125 = scmp.eq.s32.totalorder %s19, 1
      %p126 = por %p124, %p125
      %p127 = scmp.ne.s32.totalorder %s118, %s119
      %p128 = scmp.eq.s32.totalorder %s19, 0
      %p129 = por %p127, %p128
      %p130 = scmp.ne.s32.totalorder %s118, %s119
      %p131 = scmp.eq.s32.totalorder %s20, 1
      %p132 = por %p130, %p131
      %p134 = scmp.ne.s32.totalorder %s119, %s133
      %p135 = scmp.eq.s32.totalorder %s20, 0
      %p136 = por %p134, %p135
      %s137 = ssub.s32 %s14, %s21
      %p138 = scmp.eq.s32.totalorder %s137, 0
      %s140 = sadd.s32 %s139, 1
      %s141 = scalar_select %p138, %s139, %s140
      %p144 = pneg %p138
      %p145 = scmp.eq.s32.totalorder %s14, 1
      %p146 = por %p144, %p145
      %p147 = scmp.ne.s32.totalorder %s139, %s142
      %p148 = scmp.eq.s32.totalorder %s14, 0
      %p149 = por %p147, %p148
      %p150 = scmp.ne.s32.totalorder %s139, %s142
      %p151 = scmp.eq.s32.totalorder %s19, 1
      %p152 = por %p150, %p151
      %p153 = scmp.ne.s32.totalorder %s142, %s143
      %p154 = scmp.eq.s32.totalorder %s19, 0
      %p155 = por %p153, %p154
      %p156 = scmp.ne.s32.totalorder %s142, %s143
      %p157 = scmp.eq.s32.totalorder %s20, 1
      %p158 = por %p156, %p157
      %p160 = scmp.ne.s32.totalorder %s143, %s159
      %p161 = scmp.eq.s32.totalorder %s20, 0
      %p162 = por %p160, %p161
      %p163 = scmp.le.s32.totalorder 1, %s14
      %p164 = scmp.lt.s32.totalorder %s14, 3
      %p165 = pnand %p163, %p164
      %p166 = pneg %p165
      // Predicated region
      $region9: #{tpu_custom_call.1} parent=5 // pred_check
        _
      $region10: #{tpu_custom_call.1} parent=5 // pred_check_branch
        %168 = sbr.rel (%p165) target = $region12
      $region11: #{tpu_custom_call.1} parent=5 // pred_region
        %s169 = ssub.s32 %s14, 1
        // Predicated region
        $region13: #{tpu_custom_call.1} parent=11 // pred_check
          %p170 = pneg %p87
        $region14: #{tpu_custom_call.1} parent=11 // pred_check_branch
          %172 = sbr.rel (%p170) target = $region16
        $region15: #{tpu_custom_call.1} parent=11 // pred_region
          _
        $region16: #{tpu_custom_call.1} parent=11 // pred_fallthru
          _
        // Predicated region
        $region17: #{tpu_custom_call.1} parent=11 // pred_check
          %p173 = pneg %p108
        $region18: #{tpu_custom_call.1} parent=11 // pred_check_branch
          %175 = sbr.rel (%p173) target = $region20
        $region19: #{tpu_custom_call.1} parent=11 // pred_region
          _
        $region20: #{tpu_custom_call.1} parent=11 // pred_fallthru
          _
        // Predicated region
        $region21: #{tpu_custom_call.1} parent=11 // pred_check
          %p176 = pneg %p129
        $region22: #{tpu_custom_call.1} parent=11 // pred_check_branch
          %178 = sbr.rel (%p176) target = $region24
        $region23: #{tpu_custom_call.1} parent=11 // pred_region
          _
        $region24: #{tpu_custom_call.1} parent=11 // pred_fallthru
          _
      $region12: #{tpu_custom_call.1} parent=5 // pred_fallthru
        _
      %p179 = scmp.lt.s32.totalorder %s14, 2
      // Predicated region
      $region25: #{tpu_custom_call.1} parent=5 // pred_check
        %p180 = pneg %p179
      $region26: #{tpu_custom_call.1} parent=5 // pred_check_branch
        %182 = sbr.rel (%p180) target = $region28
      $region27: #{tpu_custom_call.1} parent=5 // pred_region
        // Predicated region
        $region29: #{tpu_custom_call.1} parent=27 // pred_check
          %p183 = pneg %p34
        $region30: #{tpu_custom_call.1} parent=27 // pred_check_branch
          %185 = sbr.rel (%p183) target = $region32
        $region31: #{tpu_custom_call.1} parent=27 // pred_region
          %p186 = scmp.lt.s32.totalorder %s14, 1
          %s187 = scalar_select %p186, %s14, 1
          %s188 = smul.addr %s187, 8
          %s189 = scalar_lea.vmem %s0, %s188
        $region32: #{tpu_custom_call.1} parent=27 // pred_fallthru
          _
        // Predicated region
        $region33: #{tpu_custom_call.1} parent=27 // pred_check
          %p190 = pneg %p60
        $region34: #{tpu_custom_call.1} parent=27 // pred_check_branch
          %192 = sbr.rel (%p190) target = $region36
        $region35: #{tpu_custom_call.1} parent=27 // pred_region
          %p193 = scmp.lt.s32.totalorder %s14, 1
          %s194 = scalar_select %p193, %s14, 1
          %s195 = smul.addr %s194, 4
          %s196 = scalar_lea.vmem %s1, %s195
        $region36: #{tpu_custom_call.1} parent=27 // pred_fallthru
          _
      $region28: #{tpu_custom_call.1} parent=5 // pred_fallthru
        _
      %p197 = scmp.le.s32.totalorder 1, %s14
      %p198 = scmp.lt.s32.totalorder %s14, 3
      %p199 = pnand %p197, %p198
      %p200 = pneg %p199
      // Predicated region
      $region37: #{tpu_custom_call.1} parent=5 // pred_check
        _
      $region38: #{tpu_custom_call.1} parent=5 // pred_check_branch
        %202 = sbr.rel (%p199) target = $region40
      $region39: #{tpu_custom_call.1} parent=5 // pred_region
        %s203 = ssub.s32 %s14, 1
        %p204 = scmp.lt.s32.totalorder %s19, 1
        %s205 = scalar_select %p204, %s19, 1
        %s206 = smul.addr %s205, 8
        %s207 = scalar_lea.vmem %s0, %s206
        %p208 = pneg %p40
        %p209 = pneg %p37
        %p210 = scmp.lt.s32.totalorder %s19, 1
        %s211 = scalar_select %p210, %s19, 1
        %s212 = smul.addr %s211, 4
        %s213 = scalar_lea.vmem %s1, %s212
        %p214 = pneg %p66
        %p215 = pneg %p63
        %p216 = pneg %p87
        %p217 = pneg %p84
        %p218 = pneg %p108
        %p219 = pneg %p105
        %p220 = pneg %p129
        %p221 = pneg %p126
        %p222 = pneg %p155
        %p223 = pneg %p152
        %s224 = sand.u32 %s142, 1
        %s225 = scalar_lea.sflag [#allocation3], %s224
        %s226 = sand.u32 %s142, 1
        %s227 = smul.addr %s226, 8
        %s228 = scalar_lea.vmem [#allocation2], %s227
        %p229 = scmp.lt.s32.totalorder %s19, 1
        %s230 = scalar_select %p229, %s19, 1
        %s231 = smul.addr %s230, 8
        %s232 = scalar_lea.vmem %s0, %s231
        %p233 = scmp.lt.s32.totalorder %s19, 1
        %s234 = scalar_select %p233, %s19, 1
        %s235 = smul.addr %s234, 4
        %s236 = scalar_lea.vmem %s1, %s235
        %v237 = vld [vmem:[%s232] sm:$0xff]
        %v238 = vld [vmem:[%s2] sm:$0xff]
        %v239 = vld [vmem:[%s2 + $0x8] sm:$0xff]
        %v240 = vld [vmem:[%s2 + $0x10] sm:$0xff]
        %v241 = vld [vmem:[%s2 + $0x18] sm:$0xff]
        %v242 = vld [vmem:[%s2 + $0x20] sm:$0xff]
        %v243 = vld [vmem:[%s2 + $0x28] sm:$0xff]
        %v244 = vld [vmem:[%s2 + $0x30] sm:$0xff]
        %v245 = vld [vmem:[%s2 + $0x38] sm:$0xff]
        %v246 = vld [vmem:[%s2 + $0x40] sm:$0xff]
        %v247 = vld [vmem:[%s2 + $0x48] sm:$0xff]
        %v248 = vld [vmem:[%s2 + $0x50] sm:$0xff]
        %v249 = vld [vmem:[%s2 + $0x58] sm:$0xff]
        %v250 = vld [vmem:[%s2 + $0x60] sm:$0xff]
        %v251 = vld [vmem:[%s2 + $0x68] sm:$0xff]
        %v252 = vld [vmem:[%s2 + $0x70] sm:$0xff]
        %v253 = vld [vmem:[%s2 + $0x78] sm:$0xff]
        %v254 = vld [vmem:[%s2 + $0x80] sm:$0xff]
        %v255 = vld [vmem:[%s2 + $0x88] sm:$0xff]
        %v256 = vld [vmem:[%s2 + $0x90] sm:$0xff]
        %v257 = vld [vmem:[%s2 + $0x98] sm:$0xff]
        %v258 = vld [vmem:[%s2 + $0xa0] sm:$0xff]
        %v259 = vld [vmem:[%s2 + $0xa8] sm:$0xff]
        %v260 = vld [vmem:[%s2 + $0xb0] sm:$0xff]
        %v261 = vld [vmem:[%s2 + $0xb8] sm:$0xff]
        %vm262 = vcmask 261120
        %v264 = vsel %vm262, %v237, 0
        %266 = vmatprep.subr.mxu0 %v239
        %267 = vmatpush1.msra.mxu0 %v238
        %268 = vmatprep.subr.mxu0 %v245
        %269 = vmatpush1.msra.mxu0 %v244
        %270 = vmatprep.subr.mxu0 %v251
        %271 = vmatpush1.msra.mxu0 %v250
        %272 = vmatprep.subr.mxu0 %v257
        %273 = vmatpush1.msra.mxu0 %v256
        %274 = vmatprep.subr.mxu0 0.0
        %275 = vmatpush1.msra.mxu0 0.0
        %276 = vmatprep.subr.mxu0 0.0
        %277 = vmatpush1.msra.mxu0 0.0
        %278 = vmatprep.subr.mxu0 0.0
        %279 = vmatpush1.msra.mxu0 0.0
        %280 = vmatprep.subr.mxu0 0.0
        %281 = vmatpush1.msra.mxu0 0.0
        %282 = vmatprep.subr.mxu0 0.0
        %283 = vmatpush1.msra.mxu0 0.0
        %284 = vmatprep.subr.mxu0 0.0
        %285 = vmatpush1.msra.mxu0 0.0
        %286 = vmatprep.subr.mxu0 0.0
        %287 = vmatpush1.msra.mxu0 0.0
        %288 = vmatprep.subr.mxu0 0.0
        %289 = vmatpush1.msra.mxu0 0.0
        %290 = vmatprep.subr.mxu0 0.0
        %291 = vmatpush1.msra.mxu0 0.0
        %292 = vmatprep.subr.mxu0 0.0
        %293 = vmatpush1.msra.mxu0 0.0
        %294 = vmatprep.subr.mxu0 0.0
        %295 = vmatpush1.msra.mxu0 0.0
        %296 = vmatprep.subr.mxu0 0.0
        %297 = vmatpush1.msra.mxu0 0.0
        %298 = vmatprep.subr.mxu0 0.0
        %299 = vmatpush1.msra.mxu0 0.0
        %300 = vmatprep.subr.mxu0 0.0
        %301 = vmatpush1.msra.mxu0 0.0
        %302 = vmatprep.subr.mxu0 0.0
        %303 = vmatpush1.msra.mxu0 0.0
        %304 = vmatprep.subr.mxu0 0.0
        %305 = vmatpush1.msra.mxu0 0.0
        %306 = vmatprep.subr.mxu0 0.0
        %307 = vmatpush1.msra.mxu0 0.0
        %308 = vmatprep.subr.mxu0 0.0
        %309 = vmatpush1.msra.mxu0 0.0
        %310 = vmatprep.subr.mxu0 0.0
        %311 = vmatpush1.msra.mxu0 0.0
        %312 = vmatprep.subr.mxu0 0.0
        %313 = vmatpush1.msra.mxu0 0.0
        %314 = vmatprep.subr.mxu0 0.0
        %315 = vmatpush1.msra.mxu0 0.0
        %316 = vmatprep.subr.mxu0 0.0
        %317 = vmatpush1.msra.mxu0 0.0
        %318 = vmatprep.subr.mxu0 0.0
        %319 = vmatpush1.msra.mxu0 0.0
        %320 = vmatprep.subr.mxu0 0.0
        %321 = vmatpush1.msra.mxu0 0.0
        %322 = vmatprep.subr.mxu0 0.0
        %323 = vmatpush1.msra.mxu0 0.0
        %324 = vmatprep.subr.mxu0 0.0
        %325 = vmatpush1.msra.mxu0 0.0
        %326 = vmatprep.subr.mxu0 0.0
        %327 = vmatpush1.msra.mxu0 0.0
        %328 = vmatprep.subr.mxu0 0.0
        %329 = vmatpush1.msra.mxu0 0.0
        %330 = vmatprep.mubr.f32.mxu0 0.0
        %331 = vmatmul.mubr.f32.gmra.mrb[0].mxu0 %v264
        %v332 = vpop.f32.mrb[0].mxu0
        %v333 = vadd.f32 0.0, %v332
        %v334 = vpop.f32.mrb[0].mxu0
        %v335 = vadd.f32 0.0, %v334
        %336 = vdwg.mxu0
        %337 = vmatprep.subr.mxu0 %v241
        %338 = vmatpush1.msra.mxu0 %v240
        %339 = vmatprep.subr.mxu0 %v247
        %340 = vmatpush1.msra.mxu0 %v246
        %341 = vmatprep.subr.mxu0 %v253
        %342 = vmatpush1.msra.mxu0 %v252
        %343 = vmatprep.subr.mxu0 %v259
        %344 = vmatpush1.msra.mxu0 %v258
        %345 = vmatprep.subr.mxu0 0.0
        %346 = vmatpush1.msra.mxu0 0.0
        %347 = vmatprep.subr.mxu0 0.0
        %348 = vmatpush1.msra.mxu0 0.0
        %349 = vmatprep.subr.mxu0 0.0
        %350 = vmatpush1.msra.mxu0 0.0
        %351 = vmatprep.subr.mxu0 0.0
        %352 = vmatpush1.msra.mxu0 0.0
        %353 = vmatprep.subr.mxu0 0.0
        %354 = vmatpush1.msra.mxu0 0.0
        %355 = vmatprep.subr.mxu0 0.0
        %356 = vmatpush1.msra.mxu0 0.0
        %357 = vmatprep.subr.mxu0 0.0
        %358 = vmatpush1.msra.mxu0 0.0
        %359 = vmatprep.subr.mxu0 0.0
        %360 = vmatpush1.msra.mxu0 0.0
        %361 = vmatprep.subr.mxu0 0.0
        %362 = vmatpush1.msra.mxu0 0.0
        %363 = vmatprep.subr.mxu0 0.0
        %364 = vmatpush1.msra.mxu0 0.0
        %365 = vmatprep.subr.mxu0 0.0
        %366 = vmatpush1.msra.mxu0 0.0
        %367 = vmatprep.subr.mxu0 0.0
        %368 = vmatpush1.msra.mxu0 0.0
        %369 = vmatprep.subr.mxu0 0.0
        %370 = vmatpush1.msra.mxu0 0.0
        %371 = vmatprep.subr.mxu0 0.0
        %372 = vmatpush1.msra.mxu0 0.0
        %373 = vmatprep.subr.mxu0 0.0
        %374 = vmatpush1.msra.mxu0 0.0
        %375 = vmatprep.subr.mxu0 0.0
        %376 = vmatpush1.msra.mxu0 0.0
        %377 = vmatprep.subr.mxu0 0.0
        %378 = vmatpush1.msra.mxu0 0.0
        %379 = vmatprep.subr.mxu0 0.0
        %380 = vmatpush1.msra.mxu0 0.0
        %381 = vmatprep.subr.mxu0 0.0
        %382 = vmatpush1.msra.mxu0 0.0
        %383 = vmatprep.subr.mxu0 0.0
        %384 = vmatpush1.msra.mxu0 0.0
        %385 = vmatprep.subr.mxu0 0.0
        %386 = vmatpush1.msra.mxu0 0.0
        %387 = vmatprep.subr.mxu0 0.0
        %388 = vmatpush1.msra.mxu0 0.0
        %389 = vmatprep.subr.mxu0 0.0
        %390 = vmatpush1.msra.mxu0 0.0
        %391 = vmatprep.subr.mxu0 0.0
        %392 = vmatpush1.msra.mxu0 0.0
        %393 = vmatprep.subr.mxu0 0.0
        %394 = vmatpush1.msra.mxu0 0.0
        %395 = vmatprep.subr.mxu0 0.0
        %396 = vmatpush1.msra.mxu0 0.0
        %397 = vmatprep.subr.mxu0 0.0
        %398 = vmatpush1.msra.mxu0 0.0
        %399 = vmatprep.subr.mxu0 0.0
        %400 = vmatpush1.msra.mxu0 0.0
        %401 = vmatprep.mubr.f32.mxu0 0.0
        %402 = vmatmul.mubr.f32.gmra.mrb[0].mxu0 %v264
        %v403 = vpop.f32.mrb[0].mxu0
        %v404 = vadd.f32 0.0, %v403
        %v405 = vpop.f32.mrb[0].mxu0
        %v406 = vadd.f32 0.0, %v405
        %407 = vdwg.mxu0
        %408 = vmatprep.subr.mxu0 %v243
        %409 = vmatpush1.msra.mxu0 %v242
        %410 = vmatprep.subr.mxu0 %v249
        %411 = vmatpush1.msra.mxu0 %v248
        %412 = vmatprep.subr.mxu0 %v255
        %413 = vmatpush1.msra.mxu0 %v254
        %414 = vmatprep.subr.mxu0 %v261
        %415 = vmatpush1.msra.mxu0 %v260
        %416 = vmatprep.subr.mxu0 0.0
        %417 = vmatpush1.msra.mxu0 0.0
        %418 = vmatprep.subr.mxu0 0.0
        %419 = vmatpush1.msra.mxu0 0.0
        %420 = vmatprep.subr.mxu0 0.0
        %421 = vmatpush1.msra.mxu0 0.0
        %422 = vmatprep.subr.mxu0 0.0
        %423 = vmatpush1.msra.mxu0 0.0
        %424 = vmatprep.subr.mxu0 0.0
        %425 = vmatpush1.msra.mxu0 0.0
        %426 = vmatprep.subr.mxu0 0.0
        %427 = vmatpush1.msra.mxu0 0.0
        %428 = vmatprep.subr.mxu0 0.0
        %429 = vmatpush1.msra.mxu0 0.0
        %430 = vmatprep.subr.mxu0 0.0
        %431 = vmatpush1.msra.mxu0 0.0
        %432 = vmatprep.subr.mxu0 0.0
        %433 = vmatpush1.msra.mxu0 0.0
        %434 = vmatprep.subr.mxu0 0.0
        %435 = vmatpush1.msra.mxu0 0.0
        %436 = vmatprep.subr.mxu0 0.0
        %437 = vmatpush1.msra.mxu0 0.0
        %438 = vmatprep.subr.mxu0 0.0
        %439 = vmatpush1.msra.mxu0 0.0
        %440 = vmatprep.subr.mxu0 0.0
        %441 = vmatpush1.msra.mxu0 0.0
        %442 = vmatprep.subr.mxu0 0.0
        %443 = vmatpush1.msra.mxu0 0.0
        %444 = vmatprep.subr.mxu0 0.0
        %445 = vmatpush1.msra.mxu0 0.0
        %446 = vmatprep.subr.mxu0 0.0
        %447 = vmatpush1.msra.mxu0 0.0
        %448 = vmatprep.subr.mxu0 0.0
        %449 = vmatpush1.msra.mxu0 0.0
        %450 = vmatprep.subr.mxu0 0.0
        %451 = vmatpush1.msra.mxu0 0.0
        %452 = vmatprep.subr.mxu0 0.0
        %453 = vmatpush1.msra.mxu0 0.0
        %454 = vmatprep.subr.mxu0 0.0
        %455 = vmatpush1.msra.mxu0 0.0
        %456 = vmatprep.subr.mxu0 0.0
        %457 = vmatpush1.msra.mxu0 0.0
        %458 = vmatprep.subr.mxu0 0.0
        %459 = vmatpush1.msra.mxu0 0.0
        %460 = vmatprep.subr.mxu0 0.0
        %461 = vmatpush1.msra.mxu0 0.0
        %462 = vmatprep.subr.mxu0 0.0
        %463 = vmatpush1.msra.mxu0 0.0
        %464 = vmatprep.subr.mxu0 0.0
        %465 = vmatpush1.msra.mxu0 0.0
        %466 = vmatprep.subr.mxu0 0.0
        %467 = vmatpush1.msra.mxu0 0.0
        %468 = vmatprep.subr.mxu0 0.0
        %469 = vmatpush1.msra.mxu0 0.0
        %470 = vmatprep.subr.mxu0 0.0
        %471 = vmatpush1.msra.mxu0 0.0
        %472 = vmatprep.mubr.f32.mxu0 0.0
        %473 = vmatmul.mubr.f32.gmra.mrb[0].mxu0 %v264
        %v474 = vpop.f32.mrb[0].mxu0
        %v475 = vadd.f32 0.0, %v474
        %v476 = vpop.f32.mrb[0].mxu0
        %v477 = vadd.f32 0.0, %v476
        %478 = vdwg.mxu0
        %v479 = vld [vmem:[%s236] sm:$0xf]
        %v480 = vunpack.c.l.bf16 %v479
        %v482 = vsel %vm262, %v333, 0
        %v485 = vsel %vm262, %v404, 0
        %487 = vmatprep.subr.mxu0 0.0
        %488 = vmatpush1.xpose.msra.mxu0 %v485
        %489 = vmatprep.subr.mxu0 0.0
        %490 = vmatpush1.xpose.msra.mxu0 0.0
        %491 = vmatprep.subr.mxu0 0.0
        %492 = vmatpush1.xpose.msra.mxu0 0.0
        %493 = vmatprep.subr.mxu0 0.0
        %494 = vmatpush1.xpose.msra.mxu0 0.0
        %495 = vmatprep.subr.mxu0 0.0
        %496 = vmatpush1.xpose.msra.mxu0 0.0
        %497 = vmatprep.subr.mxu0 0.0
        %498 = vmatpush1.xpose.msra.mxu0 0.0
        %499 = vmatprep.subr.mxu0 0.0
        %500 = vmatpush1.xpose.msra.mxu0 0.0
        %501 = vmatprep.subr.mxu0 0.0
        %502 = vmatpush1.xpose.msra.mxu0 0.0
        %503 = vmatprep.subr.mxu0 0.0
        %504 = vmatpush1.xpose.msra.mxu0 0.0
        %505 = vmatprep.subr.mxu0 0.0
        %506 = vmatpush1.xpose.msra.mxu0 0.0
        %507 = vmatprep.subr.mxu0 0.0
        %508 = vmatpush1.xpose.msra.mxu0 0.0
        %509 = vmatprep.subr.mxu0 0.0
        %510 = vmatpush1.xpose.msra.mxu0 0.0
        %511 = vmatprep.subr.mxu0 0.0
        %512 = vmatpush1.xpose.msra.mxu0 0.0
        %513 = vmatprep.subr.mxu0 0.0
        %514 = vmatpush1.xpose.msra.mxu0 0.0
        %515 = vmatprep.subr.mxu0 0.0
        %516 = vmatpush1.xpose.msra.mxu0 0.0
        %517 = vmatprep.subr.mxu0 0.0
        %518 = vmatpush1.xpose.msra.mxu0 0.0
        %519 = vmatprep.subr.mxu0 0.0
        %520 = vmatpush1.xpose.msra.mxu0 0.0
        %521 = vmatprep.subr.mxu0 0.0
        %522 = vmatpush1.xpose.msra.mxu0 0.0
        %523 = vmatprep.subr.mxu0 0.0
        %524 = vmatpush1.xpose.msra.mxu0 0.0
        %525 = vmatprep.subr.mxu0 0.0
        %526 = vmatpush1.xpose.msra.mxu0 0.0
        %527 = vmatprep.subr.mxu0 0.0
        %528 = vmatpush1.xpose.msra.mxu0 0.0
        %529 = vmatprep.subr.mxu0 0.0
        %530 = vmatpush1.xpose.msra.mxu0 0.0
        %531 = vmatprep.subr.mxu0 0.0
        %532 = vmatpush1.xpose.msra.mxu0 0.0
        %533 = vmatprep.subr.mxu0 0.0
        %534 = vmatpush1.xpose.msra.mxu0 0.0
        %535 = vmatprep.subr.mxu0 0.0
        %536 = vmatpush1.xpose.msra.mxu0 0.0
        %537 = vmatprep.subr.mxu0 0.0
        %538 = vmatpush1.xpose.msra.mxu0 0.0
        %539 = vmatprep.subr.mxu0 0.0
        %540 = vmatpush1.xpose.msra.mxu0 0.0
        %541 = vmatprep.subr.mxu0 0.0
        %542 = vmatpush1.xpose.msra.mxu0 0.0
        %543 = vmatprep.subr.mxu0 0.0
        %544 = vmatpush1.xpose.msra.mxu0 0.0
        %545 = vmatprep.subr.mxu0 0.0
        %546 = vmatpush1.xpose.msra.mxu0 0.0
        %547 = vmatprep.subr.mxu0 0.0
        %548 = vmatpush1.xpose.msra.mxu0 0.0
        %549 = vmatprep.subr.mxu0 0.0
        %550 = vmatpush1.xpose.msra.mxu0 0.0
        %551 = vmatprep.mubr.f32.mxu0 0.0
        %552 = vmatmul.mubr.f32.gmra.mrb[0].mxu0 %v482
        %v553 = vpop.f32.mrb[0].mxu0
        %v554 = vadd.f32 0.0, %v553
        %v555 = vpop.f32.mrb[0].mxu0
        %556 = vdwg.mxu0
        %v557 = vmul.f32 %v554, 0.17677669
        %v558 = vadd.f32 %v557, %v480
        %vm559 = vcmask 64512
        %v560 = vsel %vm559, %v558, -inf
        %561 = vmax.xlane.f32.xlu0 %v560
        %v562 = vpop.xlane.xlu0 %561
        %v563 = vsub.f32 %v558, %v562
        %v564 = vmul.f32 %v563, 1.442695
        %v565 = vpow.pop %v564
        %v566 = vsel %vm559, %v565, 0.0
        %567 = vadd.xlane.f32.xlu0 %v566
        %v568 = vpop.xlane.xlu0 %567
        %v569 = vrcp.pop %v568
        %v571 = vsel %vm559, %v565, 0
        %573 = vmatprep.subr.mxu0 0.0
        %574 = vmatpush1.msra.mxu0 %v475
        %575 = vmatprep.subr.mxu0 0.0
        %576 = vmatpush1.msra.mxu0 0.0
        %577 = vmatprep.subr.mxu0 0.0
        %578 = vmatpush1.msra.mxu0 0.0
        %579 = vmatprep.subr.mxu0 0.0
        %580 = vmatpush1.msra.mxu0 0.0
        %581 = vmatprep.subr.mxu0 0.0
        %582 = vmatpush1.msra.mxu0 0.0
        %583 = vmatprep.subr.mxu0 0.0
        %584 = vmatpush1.msra.mxu0 0.0
        %585 = vmatprep.subr.mxu0 0.0
        %586 = vmatpush1.msra.mxu0 0.0
        %587 = vmatprep.subr.mxu0 0.0
        %588 = vmatpush1.msra.mxu0 0.0
        %589 = vmatprep.subr.mxu0 0.0
        %590 = vmatpush1.msra.mxu0 0.0
        %591 = vmatprep.subr.mxu0 0.0
        %592 = vmatpush1.msra.mxu0 0.0
        %593 = vmatprep.subr.mxu0 0.0
        %594 = vmatpush1.msra.mxu0 0.0
        %595 = vmatprep.subr.mxu0 0.0
        %596 = vmatpush1.msra.mxu0 0.0
        %597 = vmatprep.subr.mxu0 0.0
        %598 = vmatpush1.msra.mxu0 0.0
        %599 = vmatprep.subr.mxu0 0.0
        %600 = vmatpush1.msra.mxu0 0.0
        %601 = vmatprep.subr.mxu0 0.0
        %602 = vmatpush1.msra.mxu0 0.0
        %603 = vmatprep.subr.mxu0 0.0
        %604 = vmatpush1.msra.mxu0 0.0
        %605 = vmatprep.subr.mxu0 0.0
        %606 = vmatpush1.msra.mxu0 0.0
        %607 = vmatprep.subr.mxu0 0.0
        %608 = vmatpush1.msra.mxu0 0.0
        %609 = vmatprep.subr.mxu0 0.0
        %610 = vmatpush1.msra.mxu0 0.0
        %611 = vmatprep.subr.mxu0 0.0
        %612 = vmatpush1.msra.mxu0 0.0
        %613 = vmatprep.subr.mxu0 0.0
        %614 = vmatpush1.msra.mxu0 0.0
        %615 = vmatprep.subr.mxu0 0.0
        %616 = vmatpush1.msra.mxu0 0.0
        %617 = vmatprep.subr.mxu0 0.0
        %618 = vmatpush1.msra.mxu0 0.0
        %619 = vmatprep.subr.mxu0 0.0
        %620 = vmatpush1.msra.mxu0 0.0
        %621 = vmatprep.subr.mxu0 0.0
        %622 = vmatpush1.msra.mxu0 0.0
        %623 = vmatprep.subr.mxu0 0.0
        %624 = vmatpush1.msra.mxu0 0.0
        %625 = vmatprep.subr.mxu0 0.0
        %626 = vmatpush1.msra.mxu0 0.0
        %627 = vmatprep.subr.mxu0 0.0
        %628 = vmatpush1.msra.mxu0 0.0
        %629 = vmatprep.subr.mxu0 0.0
        %630 = vmatpush1.msra.mxu0 0.0
        %631 = vmatprep.subr.mxu0 0.0
        %632 = vmatpush1.msra.mxu0 0.0
        %633 = vmatprep.subr.mxu0 0.0
        %634 = vmatpush1.msra.mxu0 0.0
        %635 = vmatprep.subr.mxu0 0.0
        %636 = vmatpush1.msra.mxu0 0.0
        %637 = vmatprep.mubr.f32.mxu0 0.0
        %638 = vmatmul.mubr.f32.gmra.mrb[0].mxu0 %v571
        %v639 = vpop.f32.mrb[0].mxu0
        %v640 = vadd.f32 0.0, %v639
        %v641 = vpop.f32.mrb[0].mxu0
        %642 = vdwg.mxu0
        %v643 = vmul.f32 %v640, %v569
        %644 = vrot.lane.b32.xlu0 %v333, 96
        %v645 = vpop.permute.xlu0 %644
        %646 = vrot.lane.b32.xlu0 %v404, 96
        %v647 = vpop.permute.xlu0 %646
        %v648 = vsel %vm262, %v645, 0
        %v650 = vsel %vm262, %v647, 0
        %652 = vmatprep.subr.mxu0 0.0
        %653 = vmatpush1.xpose.msra.mxu0 %v650
        %654 = vmatprep.subr.mxu0 0.0
        %655 = vmatpush1.xpose.msra.mxu0 0.0
        %656 = vmatprep.subr.mxu0 0.0
        %657 = vmatpush1.xpose.msra.mxu0 0.0
        %658 = vmatprep.subr.mxu0 0.0
        %659 = vmatpush1.xpose.msra.mxu0 0.0
        %660 = vmatprep.subr.mxu0 0.0
        %661 = vmatpush1.xpose.msra.mxu0 0.0
        %662 = vmatprep.subr.mxu0 0.0
        %663 = vmatpush1.xpose.msra.mxu0 0.0
        %664 = vmatprep.subr.mxu0 0.0
        %665 = vmatpush1.xpose.msra.mxu0 0.0
        %666 = vmatprep.subr.mxu0 0.0
        %667 = vmatpush1.xpose.msra.mxu0 0.0
        %668 = vmatprep.subr.mxu0 0.0
        %669 = vmatpush1.xpose.msra.mxu0 0.0
        %670 = vmatprep.subr.mxu0 0.0
        %671 = vmatpush1.xpose.msra.mxu0 0.0
        %672 = vmatprep.subr.mxu0 0.0
        %673 = vmatpush1.xpose.msra.mxu0 0.0
        %674 = vmatprep.subr.mxu0 0.0
        %675 = vmatpush1.xpose.msra.mxu0 0.0
        %676 = vmatprep.subr.mxu0 0.0
        %677 = vmatpush1.xpose.msra.mxu0 0.0
        %678 = vmatprep.subr.mxu0 0.0
        %679 = vmatpush1.xpose.msra.mxu0 0.0
        %680 = vmatprep.subr.mxu0 0.0
        %681 = vmatpush1.xpose.msra.mxu0 0.0
        %682 = vmatprep.subr.mxu0 0.0
        %683 = vmatpush1.xpose.msra.mxu0 0.0
        %684 = vmatprep.subr.mxu0 0.0
        %685 = vmatpush1.xpose.msra.mxu0 0.0
        %686 = vmatprep.subr.mxu0 0.0
        %687 = vmatpush1.xpose.msra.mxu0 0.0
        %688 = vmatprep.subr.mxu0 0.0
        %689 = vmatpush1.xpose.msra.mxu0 0.0
        %690 = vmatprep.subr.mxu0 0.0
        %691 = vmatpush1.xpose.msra.mxu0 0.0
        %692 = vmatprep.subr.mxu0 0.0
        %693 = vmatpush1.xpose.msra.mxu0 0.0
        %694 = vmatprep.subr.mxu0 0.0
        %695 = vmatpush1.xpose.msra.mxu0 0.0
        %696 = vmatprep.subr.mxu0 0.0
        %697 = vmatpush1.xpose.msra.mxu0 0.0
        %698 = vmatprep.subr.mxu0 0.0
        %699 = vmatpush1.xpose.msra.mxu0 0.0
        %700 = vmatprep.subr.mxu0 0.0
        %701 = vmatpush1.xpose.msra.mxu0 0.0
        %702 = vmatprep.subr.mxu0 0.0
        %703 = vmatpush1.xpose.msra.mxu0 0.0
        %704 = vmatprep.subr.mxu0 0.0
        %705 = vmatpush1.xpose.msra.mxu0 0.0
        %706 = vmatprep.subr.mxu0 0.0
        %707 = vmatpush1.xpose.msra.mxu0 0.0
        %708 = vmatprep.subr.mxu0 0.0
        %709 = vmatpush1.xpose.msra.mxu0 0.0
        %710 = vmatprep.subr.mxu0 0.0
        %711 = vmatpush1.xpose.msra.mxu0 0.0
        %712 = vmatprep.subr.mxu0 0.0
        %713 = vmatpush1.xpose.msra.mxu0 0.0
        %714 = vmatprep.subr.mxu0 0.0
        %715 = vmatpush1.xpose.msra.mxu0 0.0
        %716 = vmatprep.mubr.f32.mxu0 0.0
        %717 = vmatmul.mubr.f32.gmra.mrb[0].mxu0 %v648
        %v718 = vpop.f32.mrb[0].mxu0
        %v719 = vadd.f32 0.0, %v718
        %v720 = vpop.f32.mrb[0].mxu0
        %721 = vdwg.mxu0
        %v722 = vmul.f32 %v719, 0.17677669
        %v723 = vadd.f32 %v722, %v480
        %v724 = vsel %vm559, %v723, -inf
        %725 = vmax.xlane.f32.xlu0 %v724
        %v726 = vpop.xlane.xlu0 %725
        %v727 = vsub.f32 %v723, %v726
        %v728 = vmul.f32 %v727, 1.442695
        %v729 = vpow.pop %v728
        %v730 = vsel %vm559, %v729, 0.0
        %731 = vadd.xlane.f32.xlu0 %v730
        %v732 = vpop.xlane.xlu0 %731
        %v733 = vrcp.pop %v732
        %735 = vrot.lane.b32.xlu0 %v475, 96
        %v736 = vpop.permute.xlu0 %735
        %v739 = vsel %vm559, %v729, 0
        %741 = vmatprep.subr.mxu0 0.0
        %742 = vmatpush1.msra.mxu0 %v736
        %743 = vmatprep.subr.mxu0 0.0
        %744 = vmatpush1.msra.mxu0 0.0
        %745 = vmatprep.subr.mxu0 0.0
        %746 = vmatpush1.msra.mxu0 0.0
        %747 = vmatprep.subr.mxu0 0.0
        %748 = vmatpush1.msra.mxu0 0.0
        %749 = vmatprep.subr.mxu0 0.0
        %750 = vmatpush1.msra.mxu0 0.0
        %751 = vmatprep.subr.mxu0 0.0
        %752 = vmatpush1.msra.mxu0 0.0
        %753 = vmatprep.subr.mxu0 0.0
        %754 = vmatpush1.msra.mxu0 0.0
        %755 = vmatprep.subr.mxu0 0.0
        %756 = vmatpush1.msra.mxu0 0.0
        %757 = vmatprep.subr.mxu0 0.0
        %758 = vmatpush1.msra.mxu0 0.0
        %759 = vmatprep.subr.mxu0 0.0
        %760 = vmatpush1.msra.mxu0 0.0
        %761 = vmatprep.subr.mxu0 0.0
        %762 = vmatpush1.msra.mxu0 0.0
        %763 = vmatprep.subr.mxu0 0.0
        %764 = vmatpush1.msra.mxu0 0.0
        %765 = vmatprep.subr.mxu0 0.0
        %766 = vmatpush1.msra.mxu0 0.0
        %767 = vmatprep.subr.mxu0 0.0
        %768 = vmatpush1.msra.mxu0 0.0
        %769 = vmatprep.subr.mxu0 0.0
        %770 = vmatpush1.msra.mxu0 0.0
        %771 = vmatprep.subr.mxu0 0.0
        %772 = vmatpush1.msra.mxu0 0.0
        %773 = vmatprep.subr.mxu0 0.0
        %774 = vmatpush1.msra.mxu0 0.0
        %775 = vmatprep.subr.mxu0 0.0
        %776 = vmatpush1.msra.mxu0 0.0
        %777 = vmatprep.subr.mxu0 0.0
        %778 = vmatpush1.msra.mxu0 0.0
        %779 = vmatprep.subr.mxu0 0.0
        %780 = vmatpush1.msra.mxu0 0.0
        %781 = vmatprep.subr.mxu0 0.0
        %782 = vmatpush1.msra.mxu0 0.0
        %783 = vmatprep.subr.mxu0 0.0
        %784 = vmatpush1.msra.mxu0 0.0
        %785 = vmatprep.subr.mxu0 0.0
        %786 = vmatpush1.msra.mxu0 0.0
        %787 = vmatprep.subr.mxu0 0.0
        %788 = vmatpush1.msra.mxu0 0.0
        %789 = vmatprep.subr.mxu0 0.0
        %790 = vmatpush1.msra.mxu0 0.0
        %791 = vmatprep.subr.mxu0 0.0
        %792 = vmatpush1.msra.mxu0 0.0
        %793 = vmatprep.subr.mxu0 0.0
        %794 = vmatpush1.msra.mxu0 0.0
        %795 = vmatprep.subr.mxu0 0.0
        %796 = vmatpush1.msra.mxu0 0.0
        %797 = vmatprep.subr.mxu0 0.0
        %798 = vmatpush1.msra.mxu0 0.0
        %799 = vmatprep.subr.mxu0 0.0
        %800 = vmatpush1.msra.mxu0 0.0
        %801 = vmatprep.subr.mxu0 0.0
        %802 = vmatpush1.msra.mxu0 0.0
        %803 = vmatprep.subr.mxu0 0.0
        %804 = vmatpush1.msra.mxu0 0.0
        %805 = vmatprep.mubr.f32.mxu0 0.0
        %806 = vmatmul.mubr.f32.gmra.mrb[0].mxu0 %v739
        %v807 = vpop.f32.mrb[0].mxu0
        %v808 = vadd.f32 0.0, %v807
        %v809 = vpop.f32.mrb[0].mxu0
        %810 = vdwg.mxu0
        %v811 = vmul.f32 %v808, %v733
        %812 = vrot.lane.b32.xlu0 %v333, 64
        %v813 = vpop.permute.xlu0 %812
        %814 = vrot.lane.b32.xlu0 %v404, 64
        %v815 = vpop.permute.xlu0 %814
        %v816 = vsel %vm262, %v813, 0
        %v818 = vsel %vm262, %v815, 0
        %820 = vmatprep.subr.mxu0 0.0
        %821 = vmatpush1.xpose.msra.mxu0 %v818
        %822 = vmatprep.subr.mxu0 0.0
        %823 = vmatpush1.xpose.msra.mxu0 0.0
        %824 = vmatprep.subr.mxu0 0.0
        %825 = vmatpush1.xpose.msra.mxu0 0.0
        %826 = vmatprep.subr.mxu0 0.0
        %827 = vmatpush1.xpose.msra.mxu0 0.0
        %828 = vmatprep.subr.mxu0 0.0
        %829 = vmatpush1.xpose.msra.mxu0 0.0
        %830 = vmatprep.subr.mxu0 0.0
        %831 = vmatpush1.xpose.msra.mxu0 0.0
        %832 = vmatprep.subr.mxu0 0.0
        %833 = vmatpush1.xpose.msra.mxu0 0.0
        %834 = vmatprep.subr.mxu0 0.0
        %835 = vmatpush1.xpose.msra.mxu0 0.0
        %836 = vmatprep.subr.mxu0 0.0
        %837 = vmatpush1.xpose.msra.mxu0 0.0
        %838 = vmatprep.subr.mxu0 0.0
        %839 = vmatpush1.xpose.msra.mxu0 0.0
        %840 = vmatprep.subr.mxu0 0.0
        %841 = vmatpush1.xpose.msra.mxu0 0.0
        %842 = vmatprep.subr.mxu0 0.0
        %843 = vmatpush1.xpose.msra.mxu0 0.0
        %844 = vmatprep.subr.mxu0 0.0
        %845 = vmatpush1.xpose.msra.mxu0 0.0
        %846 = vmatprep.subr.mxu0 0.0
        %847 = vmatpush1.xpose.msra.mxu0 0.0
        %848 = vmatprep.subr.mxu0 0.0
        %849 = vmatpush1.xpose.msra.mxu0 0.0
        %850 = vmatprep.subr.mxu0 0.0
        %851 = vmatpush1.xpose.msra.mxu0 0.0
        %852 = vmatprep.subr.mxu0 0.0
        %853 = vmatpush1.xpose.msra.mxu0 0.0
        %854 = vmatprep.subr.mxu0 0.0
        %855 = vmatpush1.xpose.msra.mxu0 0.0
        %856 = vmatprep.subr.mxu0 0.0
        %857 = vmatpush1.xpose.msra.mxu0 0.0
        %858 = vmatprep.subr.mxu0 0.0
        %859 = vmatpush1.xpose.msra.mxu0 0.0
        %860 = vmatprep.subr.mxu0 0.0
        %861 = vmatpush1.xpose.msra.mxu0 0.0
        %862 = vmatprep.subr.mxu0 0.0
        %863 = vmatpush1.xpose.msra.mxu0 0.0
        %864 = vmatprep.subr.mxu0 0.0
        %865 = vmatpush1.xpose.msra.mxu0 0.0
        %866 = vmatprep.subr.mxu0 0.0
        %867 = vmatpush1.xpose.msra.mxu0 0.0
        %868 = vmatprep.subr.mxu0 0.0
        %869 = vmatpush1.xpose.msra.mxu0 0.0
        %870 = vmatprep.subr.mxu0 0.0
        %871 = vmatpush1.xpose.msra.mxu0 0.0
        %872 = vmatprep.subr.mxu0 0.0
        %873 = vmatpush1.xpose.msra.mxu0 0.0
        %874 = vmatprep.subr.mxu0 0.0
        %875 = vmatpush1.xpose.msra.mxu0 0.0
        %876 = vmatprep.subr.mxu0 0.0
        %877 = vmatpush1.xpose.msra.mxu0 0.0
        %878 = vmatprep.subr.mxu0 0.0
        %879 = vmatpush1.xpose.msra.mxu0 0.0
        %880 = vmatprep.subr.mxu0 0.0
        %881 = vmatpush1.xpose.msra.mxu0 0.0
        %882 = vmatprep.subr.mxu0 0.0
        %883 = vmatpush1.xpose.msra.mxu0 0.0
        %884 = vmatprep.mubr.f32.mxu0 0.0
        %885 = vmatmul.mubr.f32.gmra.mrb[0].mxu0 %v816
        %v886 = vpop.f32.mrb[0].mxu0
        %v887 = vadd.f32 0.0, %v886
        %v888 = vpop.f32.mrb[0].mxu0
        %889 = vdwg.mxu0
        %v890 = vmul.f32 %v887, 0.17677669
        %v891 = vadd.f32 %v890, %v480
        %v892 = vsel %vm559, %v891, -inf
        %893 = vmax.xlane.f32.xlu0 %v892
        %v894 = vpop.xlane.xlu0 %893
        %v895 = vsub.f32 %v891, %v894
        %v896 = vmul.f32 %v895, 1.442695
        %v897 = vpow.pop %v896
        %v898 = vsel %vm559, %v897, 0.0
        %899 = vadd.xlane.f32.xlu0 %v898
        %v900 = vpop.xlane.xlu0 %899
        %v901 = vrcp.pop %v900
        %902 = vrot.lane.b32.xlu0 %v475, 64
        %v903 = vpop.permute.xlu0 %902
        %v906 = vsel %vm559, %v897, 0
        %908 = vmatprep.subr.mxu0 0.0
        %909 = vmatpush1.msra.mxu0 %v903
        %910 = vmatprep.subr.mxu0 0.0
        %911 = vmatpush1.msra.mxu0 0.0
        %912 = vmatprep.subr.mxu0 0.0
        %913 = vmatpush1.msra.mxu0 0.0
        %914 = vmatprep.subr.mxu0 0.0
        %915 = vmatpush1.msra.mxu0 0.0
        %916 = vmatprep.subr.mxu0 0.0
        %917 = vmatpush1.msra.mxu0 0.0
        %918 = vmatprep.subr.mxu0 0.0
        %919 = vmatpush1.msra.mxu0 0.0
        %920 = vmatprep.subr.mxu0 0.0
        %921 = vmatpush1.msra.mxu0 0.0
        %922 = vmatprep.subr.mxu0 0.0
        %923 = vmatpush1.msra.mxu0 0.0
        %924 = vmatprep.subr.mxu0 0.0
        %925 = vmatpush1.msra.mxu0 0.0
        %926 = vmatprep.subr.mxu0 0.0
        %927 = vmatpush1.msra.mxu0 0.0
        %928 = vmatprep.subr.mxu0 0.0
        %929 = vmatpush1.msra.mxu0 0.0
        %930 = vmatprep.subr.mxu0 0.0
        %931 = vmatpush1.msra.mxu0 0.0
        %932 = vmatprep.subr.mxu0 0.0
        %933 = vmatpush1.msra.mxu0 0.0
        %934 = vmatprep.subr.mxu0 0.0
        %935 = vmatpush1.msra.mxu0 0.0
        %936 = vmatprep.subr.mxu0 0.0
        %937 = vmatpush1.msra.mxu0 0.0
        %938 = vmatprep.subr.mxu0 0.0
        %939 = vmatpush1.msra.mxu0 0.0
        %940 = vmatprep.subr.mxu0 0.0
        %941 = vmatpush1.msra.mxu0 0.0
        %942 = vmatprep.subr.mxu0 0.0
        %943 = vmatpush1.msra.mxu0 0.0
        %944 = vmatprep.subr.mxu0 0.0
        %945 = vmatpush1.msra.mxu0 0.0
        %946 = vmatprep.subr.mxu0 0.0
        %947 = vmatpush1.msra.mxu0 0.0
        %948 = vmatprep.subr.mxu0 0.0
        %949 = vmatpush1.msra.mxu0 0.0
        %950 = vmatprep.subr.mxu0 0.0
        %951 = vmatpush1.msra.mxu0 0.0
        %952 = vmatprep.subr.mxu0 0.0
        %953 = vmatpush1.msra.mxu0 0.0
        %954 = vmatprep.subr.mxu0 0.0
        %955 = vmatpush1.msra.mxu0 0.0
        %956 = vmatprep.subr.mxu0 0.0
        %957 = vmatpush1.msra.mxu0 0.0
        %958 = vmatprep.subr.mxu0 0.0
        %959 = vmatpush1.msra.mxu0 0.0
        %960 = vmatprep.subr.mxu0 0.0
        %961 = vmatpush1.msra.mxu0 0.0
        %962 = vmatprep.subr.mxu0 0.0
        %963 = vmatpush1.msra.mxu0 0.0
        %964 = vmatprep.subr.mxu0 0.0
        %965 = vmatpush1.msra.mxu0 0.0
        %966 = vmatprep.subr.mxu0 0.0
        %967 = vmatpush1.msra.mxu0 0.0
        %968 = vmatprep.subr.mxu0 0.0
        %969 = vmatpush1.msra.mxu0 0.0
        %970 = vmatprep.subr.mxu0 0.0
        %971 = vmatpush1.msra.mxu0 0.0
        %972 = vmatprep.mubr.f32.mxu0 0.0
        %973 = vmatmul.mubr.f32.gmra.mrb[0].mxu0 %v906
        %v974 = vpop.f32.mrb[0].mxu0
        %v975 = vadd.f32 0.0, %v974
        %v976 = vpop.f32.mrb[0].mxu0
        %977 = vdwg.mxu0
        %v978 = vmul.f32 %v975, %v901
        %979 = vrot.lane.b32.xlu0 %v333, 32
        %v980 = vpop.permute.xlu0 %979
        %981 = vrot.lane.b32.xlu0 %v404, 32
        %v982 = vpop.permute.xlu0 %981
        %v983 = vsel %vm262, %v980, 0
        %v985 = vsel %vm262, %v982, 0
        %987 = vmatprep.subr.mxu0 0.0
        %988 = vmatpush1.xpose.msra.mxu0 %v985
        %989 = vmatprep.subr.mxu0 0.0
        %990 = vmatpush1.xpose.msra.mxu0 0.0
        %991 = vmatprep.subr.mxu0 0.0
        %992 = vmatpush1.xpose.msra.mxu0 0.0
        %993 = vmatprep.subr.mxu0 0.0
        %994 = vmatpush1.xpose.msra.mxu0 0.0
        %995 = vmatprep.subr.mxu0 0.0
        %996 = vmatpush1.xpose.msra.mxu0 0.0
        %997 = vmatprep.subr.mxu0 0.0
        %998 = vmatpush1.xpose.msra.mxu0 0.0
        %999 = vmatprep.subr.mxu0 0.0
        %1000 = vmatpush1.xpose.msra.mxu0 0.0
        %1001 = vmatprep.subr.mxu0 0.0
        %1002 = vmatpush1.xpose.msra.mxu0 0.0
        %1003 = vmatprep.subr.mxu0 0.0
        %1004 = vmatpush1.xpose.msra.mxu0 0.0
        %1005 = vmatprep.subr.mxu0 0.0
        %1006 = vmatpush1.xpose.msra.mxu0 0.0
        %1007 = vmatprep.subr.mxu0 0.0
        %1008 = vmatpush1.xpose.msra.mxu0 0.0
        %1009 = vmatprep.subr.mxu0 0.0
        %1010 = vmatpush1.xpose.msra.mxu0 0.0
        %1011 = vmatprep.subr.mxu0 0.0
        %1012 = vmatpush1.xpose.msra.mxu0 0.0
        %1013 = vmatprep.subr.mxu0 0.0
        %1014 = vmatpush1.xpose.msra.mxu0 0.0
        %1015 = vmatprep.subr.mxu0 0.0
        %1016 = vmatpush1.xpose.msra.mxu0 0.0
        %1017 = vmatprep.subr.mxu0 0.0
        %1018 = vmatpush1.xpose.msra.mxu0 0.0
        %1019 = vmatprep.subr.mxu0 0.0
        %1020 = vmatpush1.xpose.msra.mxu0 0.0
        %1021 = vmatprep.subr.mxu0 0.0
        %1022 = vmatpush1.xpose.msra.mxu0 0.0
        %1023 = vmatprep.subr.mxu0 0.0
        %1024 = vmatpush1.xpose.msra.mxu0 0.0
        %1025 = vmatprep.subr.mxu0 0.0
        %1026 = vmatpush1.xpose.msra.mxu0 0.0
        %1027 = vmatprep.subr.mxu0 0.0
        %1028 = vmatpush1.xpose.msra.mxu0 0.0
        %1029 = vmatprep.subr.mxu0 0.0
        %1030 = vmatpush1.xpose.msra.mxu0 0.0
        %1031 = vmatprep.subr.mxu0 0.0
        %1032 = vmatpush1.xpose.msra.mxu0 0.0
        %1033 = vmatprep.subr.mxu0 0.0
        %1034 = vmatpush1.xpose.msra.mxu0 0.0
        %1035 = vmatprep.subr.mxu0 0.0
        %1036 = vmatpush1.xpose.msra.mxu0 0.0
        %1037 = vmatprep.subr.mxu0 0.0
        %1038 = vmatpush1.xpose.msra.mxu0 0.0
        %1039 = vmatprep.subr.mxu0 0.0
        %1040 = vmatpush1.xpose.msra.mxu0 0.0
        %1041 = vmatprep.subr.mxu0 0.0
        %1042 = vmatpush1.xpose.msra.mxu0 0.0
        %1043 = vmatprep.subr.mxu0 0.0
        %1044 = vmatpush1.xpose.msra.mxu0 0.0
        %1045 = vmatprep.subr.mxu0 0.0
        %1046 = vmatpush1.xpose.msra.mxu0 0.0
        %1047 = vmatprep.subr.mxu0 0.0
        %1048 = vmatpush1.xpose.msra.mxu0 0.0
        %1049 = vmatprep.subr.mxu0 0.0
        %1050 = vmatpush1.xpose.msra.mxu0 0.0
        %1051 = vmatprep.mubr.f32.mxu0 0.0
        %1052 = vmatmul.mubr.f32.gmra.mrb[0].mxu0 %v983
        %v1053 = vpop.f32.mrb[0].mxu0
        %v1054 = vadd.f32 0.0, %v1053
        %v1055 = vpop.f32.mrb[0].mxu0
        %1056 = vdwg.mxu0
        %v1057 = vmul.f32 %v1054, 0.17677669
        %v1058 = vadd.f32 %v1057, %v480
        %v1059 = vsel %vm559, %v1058, -inf
        %1060 = vmax.xlane.f32.xlu0 %v1059
        %v1061 = vpop.xlane.xlu0 %1060
        %v1062 = vsub.f32 %v1058, %v1061
        %v1063 = vmul.f32 %v1062, 1.442695
        %v1064 = vpow.pop %v1063
        %v1065 = vsel %vm559, %v1064, 0.0
        %1066 = vadd.xlane.f32.xlu0 %v1065
        %v1067 = vpop.xlane.xlu0 %1066
        %v1068 = vrcp.pop %v1067
        %1069 = vrot.lane.b32.xlu0 %v475, 32
        %v1070 = vpop.permute.xlu0 %1069
        %v1073 = vsel %vm559, %v1064, 0
        %1075 = vmatprep.subr.mxu0 0.0
        %1076 = vmatpush1.msra.mxu0 %v1070
        %1077 = vmatprep.subr.mxu0 0.0
        %1078 = vmatpush1.msra.mxu0 0.0
        %1079 = vmatprep.subr.mxu0 0.0
        %1080 = vmatpush1.msra.mxu0 0.0
        %1081 = vmatprep.subr.mxu0 0.0
        %1082 = vmatpush1.msra.mxu0 0.0
        %1083 = vmatprep.subr.mxu0 0.0
        %1084 = vmatpush1.msra.mxu0 0.0
        %1085 = vmatprep.subr.mxu0 0.0
        %1086 = vmatpush1.msra.mxu0 0.0
        %1087 = vmatprep.subr.mxu0 0.0
        %1088 = vmatpush1.msra.mxu0 0.0
        %1089 = vmatprep.subr.mxu0 0.0
        %1090 = vmatpush1.msra.mxu0 0.0
        %1091 = vmatprep.subr.mxu0 0.0
        %1092 = vmatpush1.msra.mxu0 0.0
        %1093 = vmatprep.subr.mxu0 0.0
        %1094 = vmatpush1.msra.mxu0 0.0
        %1095 = vmatprep.subr.mxu0 0.0
        %1096 = vmatpush1.msra.mxu0 0.0
        %1097 = vmatprep.subr.mxu0 0.0
        %1098 = vmatpush1.msra.mxu0 0.0
        %1099 = vmatprep.subr.mxu0 0.0
        %1100 = vmatpush1.msra.mxu0 0.0
        %1101 = vmatprep.subr.mxu0 0.0
        %1102 = vmatpush1.msra.mxu0 0.0
        %1103 = vmatprep.subr.mxu0 0.0
        %1104 = vmatpush1.msra.mxu0 0.0
        %1105 = vmatprep.subr.mxu0 0.0
        %1106 = vmatpush1.msra.mxu0 0.0
        %1107 = vmatprep.subr.mxu0 0.0
        %1108 = vmatpush1.msra.mxu0 0.0
        %1109 = vmatprep.subr.mxu0 0.0
        %1110 = vmatpush1.msra.mxu0 0.0
        %1111 = vmatprep.subr.mxu0 0.0
        %1112 = vmatpush1.msra.mxu0 0.0
        %1113 = vmatprep.subr.mxu0 0.0
        %1114 = vmatpush1.msra.mxu0 0.0
        %1115 = vmatprep.subr.mxu0 0.0
        %1116 = vmatpush1.msra.mxu0 0.0
        %1117 = vmatprep.subr.mxu0 0.0
        %1118 = vmatpush1.msra.mxu0 0.0
        %1119 = vmatprep.subr.mxu0 0.0
        %1120 = vmatpush1.msra.mxu0 0.0
        %1121 = vmatprep.subr.mxu0 0.0
        %1122 = vmatpush1.msra.mxu0 0.0
        %1123 = vmatprep.subr.mxu0 0.0
        %1124 = vmatpush1.msra.mxu0 0.0
        %1125 = vmatprep.subr.mxu0 0.0
        %1126 = vmatpush1.msra.mxu0 0.0
        %1127 = vmatprep.subr.mxu0 0.0
        %1128 = vmatpush1.msra.mxu0 0.0
        %1129 = vmatprep.subr.mxu0 0.0
        %1130 = vmatpush1.msra.mxu0 0.0
        %1131 = vmatprep.subr.mxu0 0.0
        %1132 = vmatpush1.msra.mxu0 0.0
        %1133 = vmatprep.subr.mxu0 0.0
        %1134 = vmatpush1.msra.mxu0 0.0
        %1135 = vmatprep.subr.mxu0 0.0
        %1136 = vmatpush1.msra.mxu0 0.0
        %1137 = vmatprep.subr.mxu0 0.0
        %1138 = vmatpush1.msra.mxu0 0.0
        %1139 = vmatprep.mubr.f32.mxu0 0.0
        %1140 = vmatmul.mubr.f32.gmra.mrb[0].mxu0 %v1073
        %v1141 = vpop.f32.mrb[0].mxu0
        %v1142 = vadd.f32 0.0, %v1141
        %v1143 = vpop.f32.mrb[0].mxu0
        %1144 = vdwg.mxu0
        %v1145 = vmul.f32 %v1142, %v1068
        %v1147 = vsel %vm262, %v335, 0
        %v1150 = vsel %vm262, %v406, 0
        %1152 = vmatprep.subr.mxu0 0.0
        %1153 = vmatpush1.xpose.msra.mxu0 %v1150
        %1154 = vmatprep.subr.mxu0 0.0
        %1155 = vmatpush1.xpose.msra.mxu0 0.0
        %1156 = vmatprep.subr.mxu0 0.0
        %1157 = vmatpush1.xpose.msra.mxu0 0.0
        %1158 = vmatprep.subr.mxu0 0.0
        %1159 = vmatpush1.xpose.msra.mxu0 0.0
        %1160 = vmatprep.subr.mxu0 0.0
        %1161 = vmatpush1.xpose.msra.mxu0 0.0
        %1162 = vmatprep.subr.mxu0 0.0
        %1163 = vmatpush1.xpose.msra.mxu0 0.0
        %1164 = vmatprep.subr.mxu0 0.0
        %1165 = vmatpush1.xpose.msra.mxu0 0.0
        %1166 = vmatprep.subr.mxu0 0.0
        %1167 = vmatpush1.xpose.msra.mxu0 0.0
        %1168 = vmatprep.subr.mxu0 0.0
        %1169 = vmatpush1.xpose.msra.mxu0 0.0
        %1170 = vmatprep.subr.mxu0 0.0
        %1171 = vmatpush1.xpose.msra.mxu0 0.0
        %1172 = vmatprep.subr.mxu0 0.0
        %1173 = vmatpush1.xpose.msra.mxu0 0.0
        %1174 = vmatprep.subr.mxu0 0.0
        %1175 = vmatpush1.xpose.msra.mxu0 0.0
        %1176 = vmatprep.subr.mxu0 0.0
        %1177 = vmatpush1.xpose.msra.mxu0 0.0
        %1178 = vmatprep.subr.mxu0 0.0
        %1179 = vmatpush1.xpose.msra.mxu0 0.0
        %1180 = vmatprep.subr.mxu0 0.0
        %1181 = vmatpush1.xpose.msra.mxu0 0.0
        %1182 = vmatprep.subr.mxu0 0.0
        %1183 = vmatpush1.xpose.msra.mxu0 0.0
        %1184 = vmatprep.subr.mxu0 0.0
        %1185 = vmatpush1.xpose.msra.mxu0 0.0
        %1186 = vmatprep.subr.mxu0 0.0
        %1187 = vmatpush1.xpose.msra.mxu0 0.0
        %1188 = vmatprep.subr.mxu0 0.0
        %1189 = vmatpush1.xpose.msra.mxu0 0.0
        %1190 = vmatprep.subr.mxu0 0.0
        %1191 = vmatpush1.xpose.msra.mxu0 0.0
        %1192 = vmatprep.subr.mxu0 0.0
        %1193 = vmatpush1.xpose.msra.mxu0 0.0
        %1194 = vmatprep.subr.mxu0 0.0
        %1195 = vmatpush1.xpose.msra.mxu0 0.0
        %1196 = vmatprep.subr.mxu0 0.0
        %1197 = vmatpush1.xpose.msra.mxu0 0.0
        %1198 = vmatprep.subr.mxu0 0.0
        %1199 = vmatpush1.xpose.msra.mxu0 0.0
        %1200 = vmatprep.subr.mxu0 0.0
        %1201 = vmatpush1.xpose.msra.mxu0 0.0
        %1202 = vmatprep.subr.mxu0 0.0
        %1203 = vmatpush1.xpose.msra.mxu0 0.0
        %1204 = vmatprep.subr.mxu0 0.0
        %1205 = vmatpush1.xpose.msra.mxu0 0.0
        %1206 = vmatprep.subr.mxu0 0.0
        %1207 = vmatpush1.xpose.msra.mxu0 0.0
        %1208 = vmatprep.subr.mxu0 0.0
        %1209 = vmatpush1.xpose.msra.mxu0 0.0
        %1210 = vmatprep.subr.mxu0 0.0
        %1211 = vmatpush1.xpose.msra.mxu0 0.0
        %1212 = vmatprep.subr.mxu0 0.0
        %1213 = vmatpush1.xpose.msra.mxu0 0.0
        %1214 = vmatprep.subr.mxu0 0.0
        %1215 = vmatpush1.xpose.msra.mxu0 0.0
        %1216 = vmatprep.mubr.f32.mxu0 0.0
        %1217 = vmatmul.mubr.f32.gmra.mrb[0].mxu0 %v1147
        %v1218 = vpop.f32.mrb[0].mxu0
        %v1219 = vadd.f32 0.0, %v1218
        %v1220 = vpop.f32.mrb[0].mxu0
        %1221 = vdwg.mxu0
        %v1222 = vmul.f32 %v1219, 0.17677669
        %v1223 = vadd.f32 %v1222, %v480
        %v1224 = vsel %vm559, %v1223, -inf
        %1225 = vmax.xlane.f32.xlu0 %v1224
        %v1226 = vpop.xlane.xlu0 %1225
        %v1227 = vsub.f32 %v1223, %v1226
        %v1228 = vmul.f32 %v1227, 1.442695
        %v1229 = vpow.pop %v1228
        %v1230 = vsel %vm559, %v1229, 0.0
        %1231 = vadd.xlane.f32.xlu0 %v1230
        %v1232 = vpop.xlane.xlu0 %1231
        %v1233 = vrcp.pop %v1232
        %v1235 = vsel %vm559, %v1229, 0
        %1237 = vmatprep.subr.mxu0 0.0
        %1238 = vmatpush1.msra.mxu0 %v477
        %1239 = vmatprep.subr.mxu0 0.0
        %1240 = vmatpush1.msra.mxu0 0.0
        %1241 = vmatprep.subr.mxu0 0.0
        %1242 = vmatpush1.msra.mxu0 0.0
        %1243 = vmatprep.subr.mxu0 0.0
        %1244 = vmatpush1.msra.mxu0 0.0
        %1245 = vmatprep.subr.mxu0 0.0
        %1246 = vmatpush1.msra.mxu0 0.0
        %1247 = vmatprep.subr.mxu0 0.0
        %1248 = vmatpush1.msra.mxu0 0.0
        %1249 = vmatprep.subr.mxu0 0.0
        %1250 = vmatpush1.msra.mxu0 0.0
        %1251 = vmatprep.subr.mxu0 0.0
        %1252 = vmatpush1.msra.mxu0 0.0
        %1253 = vmatprep.subr.mxu0 0.0
        %1254 = vmatpush1.msra.mxu0 0.0
        %1255 = vmatprep.subr.mxu0 0.0
        %1256 = vmatpush1.msra.mxu0 0.0
        %1257 = vmatprep.subr.mxu0 0.0
        %1258 = vmatpush1.msra.mxu0 0.0
        %1259 = vmatprep.subr.mxu0 0.0
        %1260 = vmatpush1.msra.mxu0 0.0
        %1261 = vmatprep.subr.mxu0 0.0
        %1262 = vmatpush1.msra.mxu0 0.0
        %1263 = vmatprep.subr.mxu0 0.0
        %1264 = vmatpush1.msra.mxu0 0.0
        %1265 = vmatprep.subr.mxu0 0.0
        %1266 = vmatpush1.msra.mxu0 0.0
        %1267 = vmatprep.subr.mxu0 0.0
        %1268 = vmatpush1.msra.mxu0 0.0
        %1269 = vmatprep.subr.mxu0 0.0
        %1270 = vmatpush1.msra.mxu0 0.0
        %1271 = vmatprep.subr.mxu0 0.0
        %1272 = vmatpush1.msra.mxu0 0.0
        %1273 = vmatprep.subr.mxu0 0.0
        %1274 = vmatpush1.msra.mxu0 0.0
        %1275 = vmatprep.subr.mxu0 0.0
        %1276 = vmatpush1.msra.mxu0 0.0
        %1277 = vmatprep.subr.mxu0 0.0
        %1278 = vmatpush1.msra.mxu0 0.0
        %1279 = vmatprep.subr.mxu0 0.0
        %1280 = vmatpush1.msra.mxu0 0.0
        %1281 = vmatprep.subr.mxu0 0.0
        %1282 = vmatpush1.msra.mxu0 0.0
        %1283 = vmatprep.subr.mxu0 0.0
        %1284 = vmatpush1.msra.mxu0 0.0
        %1285 = vmatprep.subr.mxu0 0.0
        %1286 = vmatpush1.msra.mxu0 0.0
        %1287 = vmatprep.subr.mxu0 0.0
        %1288 = vmatpush1.msra.mxu0 0.0
        %1289 = vmatprep.subr.mxu0 0.0
        %1290 = vmatpush1.msra.mxu0 0.0
        %1291 = vmatprep.subr.mxu0 0.0
        %1292 = vmatpush1.msra.mxu0 0.0
        %1293 = vmatprep.subr.mxu0 0.0
        %1294 = vmatpush1.msra.mxu0 0.0
        %1295 = vmatprep.subr.mxu0 0.0
        %1296 = vmatpush1.msra.mxu0 0.0
        %1297 = vmatprep.subr.mxu0 0.0
        %1298 = vmatpush1.msra.mxu0 0.0
        %1299 = vmatprep.subr.mxu0 0.0
        %1300 = vmatpush1.msra.mxu0 0.0
        %1301 = vmatprep.mubr.f32.mxu0 0.0
        %1302 = vmatmul.mubr.f32.gmra.mrb[0].mxu0 %v1235
        %v1303 = vpop.f32.mrb[0].mxu0
        %v1304 = vadd.f32 0.0, %v1303
        %v1305 = vpop.f32.mrb[0].mxu0
        %1306 = vdwg.mxu0
        %v1307 = vmul.f32 %v1304, %v1233
        %1308 = vrot.lane.b32.xlu0 %v335, 96
        %v1309 = vpop.permute.xlu0 %1308
        %1310 = vrot.lane.b32.xlu0 %v406, 96
        %v1311 = vpop.permute.xlu0 %1310
        %v1312 = vsel %vm262, %v1309, 0
        %v1314 = vsel %vm262, %v1311, 0
        %1316 = vmatprep.subr.mxu0 0.0
        %1317 = vmatpush1.xpose.msra.mxu0 %v1314
        %1318 = vmatprep.subr.mxu0 0.0
        %1319 = vmatpush1.xpose.msra.mxu0 0.0
        %1320 = vmatprep.subr.mxu0 0.0
        %1321 = vmatpush1.xpose.msra.mxu0 0.0
        %1322 = vmatprep.subr.mxu0 0.0
        %1323 = vmatpush1.xpose.msra.mxu0 0.0
        %1324 = vmatprep.subr.mxu0 0.0
        %1325 = vmatpush1.xpose.msra.mxu0 0.0
        %1326 = vmatprep.subr.mxu0 0.0
        %1327 = vmatpush1.xpose.msra.mxu0 0.0
        %1328 = vmatprep.subr.mxu0 0.0
        %1329 = vmatpush1.xpose.msra.mxu0 0.0
        %1330 = vmatprep.subr.mxu0 0.0
        %1331 = vmatpush1.xpose.msra.mxu0 0.0
        %1332 = vmatprep.subr.mxu0 0.0
        %1333 = vmatpush1.xpose.msra.mxu0 0.0
        %1334 = vmatprep.subr.mxu0 0.0
        %1335 = vmatpush1.xpose.msra.mxu0 0.0
        %1336 = vmatprep.subr.mxu0 0.0
        %1337 = vmatpush1.xpose.msra.mxu0 0.0
        %1338 = vmatprep.subr.mxu0 0.0
        %1339 = vmatpush1.xpose.msra.mxu0 0.0
        %1340 = vmatprep.subr.mxu0 0.0
        %1341 = vmatpush1.xpose.msra.mxu0 0.0
        %1342 = vmatprep.subr.mxu0 0.0
        %1343 = vmatpush1.xpose.msra.mxu0 0.0
        %1344 = vmatprep.subr.mxu0 0.0
        %1345 = vmatpush1.xpose.msra.mxu0 0.0
        %1346 = vmatprep.subr.mxu0 0.0
        %1347 = vmatpush1.xpose.msra.mxu0 0.0
        %1348 = vmatprep.subr.mxu0 0.0
        %1349 = vmatpush1.xpose.msra.mxu0 0.0
        %1350 = vmatprep.subr.mxu0 0.0
        %1351 = vmatpush1.xpose.msra.mxu0 0.0
        %1352 = vmatprep.subr.mxu0 0.0
        %1353 = vmatpush1.xpose.msra.mxu0 0.0
        %1354 = vmatprep.subr.mxu0 0.0
        %1355 = vmatpush1.xpose.msra.mxu0 0.0
        %1356 = vmatprep.subr.mxu0 0.0
        %1357 = vmatpush1.xpose.msra.mxu0 0.0
        %1358 = vmatprep.subr.mxu0 0.0
        %1359 = vmatpush1.xpose.msra.mxu0 0.0
        %1360 = vmatprep.subr.mxu0 0.0
        %1361 = vmatpush1.xpose.msra.mxu0 0.0
        %1362 = vmatprep.subr.mxu0 0.0
        %1363 = vmatpush1.xpose.msra.mxu0 0.0
        %1364 = vmatprep.subr.mxu0 0.0
        %1365 = vmatpush1.xpose.msra.mxu0 0.0
        %1366 = vmatprep.subr.mxu0 0.0
        %1367 = vmatpush1.xpose.msra.mxu0 0.0
        %1368 = vmatprep.subr.mxu0 0.0
        %1369 = vmatpush1.xpose.msra.mxu0 0.0
        %1370 = vmatprep.subr.mxu0 0.0
        %1371 = vmatpush1.xpose.msra.mxu0 0.0
        %1372 = vmatprep.subr.mxu0 0.0
        %1373 = vmatpush1.xpose.msra.mxu0 0.0
        %1374 = vmatprep.subr.mxu0 0.0
        %1375 = vmatpush1.xpose.msra.mxu0 0.0
        %1376 = vmatprep.subr.mxu0 0.0
        %1377 = vmatpush1.xpose.msra.mxu0 0.0
        %1378 = vmatprep.subr.mxu0 0.0
        %1379 = vmatpush1.xpose.msra.mxu0 0.0
        %1380 = vmatprep.mubr.f32.mxu0 0.0
        %1381 = vmatmul.mubr.f32.gmra.mrb[0].mxu0 %v1312
        %v1382 = vpop.f32.mrb[0].mxu0
        %v1383 = vadd.f32 0.0, %v1382
        %v1384 = vpop.f32.mrb[0].mxu0
        %1385 = vdwg.mxu0
        %v1386 = vmul.f32 %v1383, 0.17677669
        %v1387 = vadd.f32 %v1386, %v480
        %v1388 = vsel %vm559, %v1387, -inf
        %1389 = vmax.xlane.f32.xlu0 %v1388
        %v1390 = vpop.xlane.xlu0 %1389
        %v1391 = vsub.f32 %v1387, %v1390
        %v1392 = vmul.f32 %v1391, 1.442695
        %v1393 = vpow.pop %v1392
        %v1394 = vsel %vm559, %v1393, 0.0
        %1395 = vadd.xlane.f32.xlu0 %v1394
        %v1396 = vpop.xlane.xlu0 %1395
        %v1397 = vrcp.pop %v1396
        %1399 = vrot.lane.b32.xlu0 %v477, 96
        %v1400 = vpop.permute.xlu0 %1399
        %v1403 = vsel %vm559, %v1393, 0
        %1405 = vmatprep.subr.mxu0 0.0
        %1406 = vmatpush1.msra.mxu0 %v1400
        %1407 = vmatprep.subr.mxu0 0.0
        %1408 = vmatpush1.msra.mxu0 0.0
        %1409 = vmatprep.subr.mxu0 0.0
        %1410 = vmatpush1.msra.mxu0 0.0
        %1411 = vmatprep.subr.mxu0 0.0
        %1412 = vmatpush1.msra.mxu0 0.0
        %1413 = vmatprep.subr.mxu0 0.0
        %1414 = vmatpush1.msra.mxu0 0.0
        %1415 = vmatprep.subr.mxu0 0.0
        %1416 = vmatpush1.msra.mxu0 0.0
        %1417 = vmatprep.subr.mxu0 0.0
        %1418 = vmatpush1.msra.mxu0 0.0
        %1419 = vmatprep.subr.mxu0 0.0
        %1420 = vmatpush1.msra.mxu0 0.0
        %1421 = vmatprep.subr.mxu0 0.0
        %1422 = vmatpush1.msra.mxu0 0.0
        %1423 = vmatprep.subr.mxu0 0.0
        %1424 = vmatpush1.msra.mxu0 0.0
        %1425 = vmatprep.subr.mxu0 0.0
        %1426 = vmatpush1.msra.mxu0 0.0
        %1427 = vmatprep.subr.mxu0 0.0
        %1428 = vmatpush1.msra.mxu0 0.0
        %1429 = vmatprep.subr.mxu0 0.0
        %1430 = vmatpush1.msra.mxu0 0.0
        %1431 = vmatprep.subr.mxu0 0.0
        %1432 = vmatpush1.msra.mxu0 0.0
        %1433 = vmatprep.subr.mxu0 0.0
        %1434 = vmatpush1.msra.mxu0 0.0
        %1435 = vmatprep.subr.mxu0 0.0
        %1436 = vmatpush1.msra.mxu0 0.0
        %1437 = vmatprep.subr.mxu0 0.0
        %1438 = vmatpush1.msra.mxu0 0.0
        %1439 = vmatprep.subr.mxu0 0.0
        %1440 = vmatpush1.msra.mxu0 0.0
        %1441 = vmatprep.subr.mxu0 0.0
        %1442 = vmatpush1.msra.mxu0 0.0
        %1443 = vmatprep.subr.mxu0 0.0
        %1444 = vmatpush1.msra.mxu0 0.0
        %1445 = vmatprep.subr.mxu0 0.0
        %1446 = vmatpush1.msra.mxu0 0.0
        %1447 = vmatprep.subr.mxu0 0.0
        %1448 = vmatpush1.msra.mxu0 0.0
        %1449 = vmatprep.subr.mxu0 0.0
        %1450 = vmatpush1.msra.mxu0 0.0
        %1451 = vmatprep.subr.mxu0 0.0
        %1452 = vmatpush1.msra.mxu0 0.0
        %1453 = vmatprep.subr.mxu0 0.0
        %1454 = vmatpush1.msra.mxu0 0.0
        %1455 = vmatprep.subr.mxu0 0.0
        %1456 = vmatpush1.msra.mxu0 0.0
        %1457 = vmatprep.subr.mxu0 0.0
        %1458 = vmatpush1.msra.mxu0 0.0
        %1459 = vmatprep.subr.mxu0 0.0
        %1460 = vmatpush1.msra.mxu0 0.0
        %1461 = vmatprep.subr.mxu0 0.0
        %1462 = vmatpush1.msra.mxu0 0.0
        %1463 = vmatprep.subr.mxu0 0.0
        %1464 = vmatpush1.msra.mxu0 0.0
        %1465 = vmatprep.subr.mxu0 0.0
        %1466 = vmatpush1.msra.mxu0 0.0
        %1467 = vmatprep.subr.mxu0 0.0
        %1468 = vmatpush1.msra.mxu0 0.0
        %1469 = vmatprep.mubr.f32.mxu0 0.0
        %1470 = vmatmul.mubr.f32.gmra.mrb[0].mxu0 %v1403
        %v1471 = vpop.f32.mrb[0].mxu0
        %v1472 = vadd.f32 0.0, %v1471
        %v1473 = vpop.f32.mrb[0].mxu0
        %1474 = vdwg.mxu0
        %v1475 = vmul.f32 %v1472, %v1397
        %1476 = vrot.lane.b32.xlu0 %v335, 64
        %v1477 = vpop.permute.xlu0 %1476
        %1478 = vrot.lane.b32.xlu0 %v406, 64
        %v1479 = vpop.permute.xlu0 %1478
        %v1480 = vsel %vm262, %v1477, 0
        %v1482 = vsel %vm262, %v1479, 0
        %1484 = vmatprep.subr.mxu0 0.0
        %1485 = vmatpush1.xpose.msra.mxu0 %v1482
        %1486 = vmatprep.subr.mxu0 0.0
        %1487 = vmatpush1.xpose.msra.mxu0 0.0
        %1488 = vmatprep.subr.mxu0 0.0
        %1489 = vmatpush1.xpose.msra.mxu0 0.0
        %1490 = vmatprep.subr.mxu0 0.0
        %1491 = vmatpush1.xpose.msra.mxu0 0.0
        %1492 = vmatprep.subr.mxu0 0.0
        %1493 = vmatpush1.xpose.msra.mxu0 0.0
        %1494 = vmatprep.subr.mxu0 0.0
        %1495 = vmatpush1.xpose.msra.mxu0 0.0
        %1496 = vmatprep.subr.mxu0 0.0
        %1497 = vmatpush1.xpose.msra.mxu0 0.0
        %1498 = vmatprep.subr.mxu0 0.0
        %1499 = vmatpush1.xpose.msra.mxu0 0.0
        %1500 = vmatprep.subr.mxu0 0.0
        %1501 = vmatpush1.xpose.msra.mxu0 0.0
        %1502 = vmatprep.subr.mxu0 0.0
        %1503 = vmatpush1.xpose.msra.mxu0 0.0
        %1504 = vmatprep.subr.mxu0 0.0
        %1505 = vmatpush1.xpose.msra.mxu0 0.0
        %1506 = vmatprep.subr.mxu0 0.0
        %1507 = vmatpush1.xpose.msra.mxu0 0.0
        %1508 = vmatprep.subr.mxu0 0.0
        %1509 = vmatpush1.xpose.msra.mxu0 0.0
        %1510 = vmatprep.subr.mxu0 0.0
        %1511 = vmatpush1.xpose.msra.mxu0 0.0
        %1512 = vmatprep.subr.mxu0 0.0
        %1513 = vmatpush1.xpose.msra.mxu0 0.0
        %1514 = vmatprep.subr.mxu0 0.0
        %1515 = vmatpush1.xpose.msra.mxu0 0.0
        %1516 = vmatprep.subr.mxu0 0.0
        %1517 = vmatpush1.xpose.msra.mxu0 0.0
        %1518 = vmatprep.subr.mxu0 0.0
        %1519 = vmatpush1.xpose.msra.mxu0 0.0
        %1520 = vmatprep.subr.mxu0 0.0
        %1521 = vmatpush1.xpose.msra.mxu0 0.0
        %1522 = vmatprep.subr.mxu0 0.0
        %1523 = vmatpush1.xpose.msra.mxu0 0.0
        %1524 = vmatprep.subr.mxu0 0.0
        %1525 = vmatpush1.xpose.msra.mxu0 0.0
        %1526 = vmatprep.subr.mxu0 0.0
        %1527 = vmatpush1.xpose.msra.mxu0 0.0
        %1528 = vmatprep.subr.mxu0 0.0
        %1529 = vmatpush1.xpose.msra.mxu0 0.0
        %1530 = vmatprep.subr.mxu0 0.0
        %1531 = vmatpush1.xpose.msra.mxu0 0.0
        %1532 = vmatprep.subr.mxu0 0.0
        %1533 = vmatpush1.xpose.msra.mxu0 0.0
        %1534 = vmatprep.subr.mxu0 0.0
        %1535 = vmatpush1.xpose.msra.mxu0 0.0
        %1536 = vmatprep.subr.mxu0 0.0
        %1537 = vmatpush1.xpose.msra.mxu0 0.0
        %1538 = vmatprep.subr.mxu0 0.0
        %1539 = vmatpush1.xpose.msra.mxu0 0.0
        %1540 = vmatprep.subr.mxu0 0.0
        %1541 = vmatpush1.xpose.msra.mxu0 0.0
        %1542 = vmatprep.subr.mxu0 0.0
        %1543 = vmatpush1.xpose.msra.mxu0 0.0
        %1544 = vmatprep.subr.mxu0 0.0
        %1545 = vmatpush1.xpose.msra.mxu0 0.0
        %1546 = vmatprep.subr.mxu0 0.0
        %1547 = vmatpush1.xpose.msra.mxu0 0.0
        %1548 = vmatprep.mubr.f32.mxu0 0.0
        %1549 = vmatmul.mubr.f32.gmra.mrb[0].mxu0 %v1480
        %v1550 = vpop.f32.mrb[0].mxu0
        %v1551 = vadd.f32 0.0, %v1550
        %v1552 = vpop.f32.mrb[0].mxu0
        %1553 = vdwg.mxu0
        %v1554 = vmul.f32 %v1551, 0.17677669
        %v1555 = vadd.f32 %v1554, %v480
        %v1556 = vsel %vm559, %v1555, -inf
        %1557 = vmax.xlane.f32.xlu0 %v1556
        %v1558 = vpop.xlane.xlu0 %1557
        %v1559 = vsub.f32 %v1555, %v1558
        %v1560 = vmul.f32 %v1559, 1.442695
        %v1561 = vpow.pop %v1560
        %v1562 = vsel %vm559, %v1561, 0.0
        %1563 = vadd.xlane.f32.xlu0 %v1562
        %v1564 = vpop.xlane.xlu0 %1563
        %v1565 = vrcp.pop %v1564
        %1566 = vrot.lane.b32.xlu0 %v477, 64
        %v1567 = vpop.permute.xlu0 %1566
        %v1570 = vsel %vm559, %v1561, 0
        %1572 = vmatprep.subr.mxu0 0.0
        %1573 = vmatpush1.msra.mxu0 %v1567
        %1574 = vmatprep.subr.mxu0 0.0
        %1575 = vmatpush1.msra.mxu0 0.0
        %1576 = vmatprep.subr.mxu0 0.0
        %1577 = vmatpush1.msra.mxu0 0.0
        %1578 = vmatprep.subr.mxu0 0.0
        %1579 = vmatpush1.msra.mxu0 0.0
        %1580 = vmatprep.subr.mxu0 0.0
        %1581 = vmatpush1.msra.mxu0 0.0
        %1582 = vmatprep.subr.mxu0 0.0
        %1583 = vmatpush1.msra.mxu0 0.0
        %1584 = vmatprep.subr.mxu0 0.0
        %1585 = vmatpush1.msra.mxu0 0.0
        %1586 = vmatprep.subr.mxu0 0.0
        %1587 = vmatpush1.msra.mxu0 0.0
        %1588 = vmatprep.subr.mxu0 0.0
        %1589 = vmatpush1.msra.mxu0 0.0
        %1590 = vmatprep.subr.mxu0 0.0
        %1591 = vmatpush1.msra.mxu0 0.0
        %1592 = vmatprep.subr.mxu0 0.0
        %1593 = vmatpush1.msra.mxu0 0.0
        %1594 = vmatprep.subr.mxu0 0.0
        %1595 = vmatpush1.msra.mxu0 0.0
        %1596 = vmatprep.subr.mxu0 0.0
        %1597 = vmatpush1.msra.mxu0 0.0
        %1598 = vmatprep.subr.mxu0 0.0
        %1599 = vmatpush1.msra.mxu0 0.0
        %1600 = vmatprep.subr.mxu0 0.0
        %1601 = vmatpush1.msra.mxu0 0.0
        %1602 = vmatprep.subr.mxu0 0.0
        %1603 = vmatpush1.msra.mxu0 0.0
        %1604 = vmatprep.subr.mxu0 0.0
        %1605 = vmatpush1.msra.mxu0 0.0
        %1606 = vmatprep.subr.mxu0 0.0
        %1607 = vmatpush1.msra.mxu0 0.0
        %1608 = vmatprep.subr.mxu0 0.0
        %1609 = vmatpush1.msra.mxu0 0.0
        %1610 = vmatprep.subr.mxu0 0.0
        %1611 = vmatpush1.msra.mxu0 0.0
        %1612 = vmatprep.subr.mxu0 0.0
        %1613 = vmatpush1.msra.mxu0 0.0
        %1614 = vmatprep.subr.mxu0 0.0
        %1615 = vmatpush1.msra.mxu0 0.0
        %1616 = vmatprep.subr.mxu0 0.0
        %1617 = vmatpush1.msra.mxu0 0.0
        %1618 = vmatprep.subr.mxu0 0.0
        %1619 = vmatpush1.msra.mxu0 0.0
        %1620 = vmatprep.subr.mxu0 0.0
        %1621 = vmatpush1.msra.mxu0 0.0
        %1622 = vmatprep.subr.mxu0 0.0
        %1623 = vmatpush1.msra.mxu0 0.0
        %1624 = vmatprep.subr.mxu0 0.0
        %1625 = vmatpush1.msra.mxu0 0.0
        %1626 = vmatprep.subr.mxu0 0.0
        %1627 = vmatpush1.msra.mxu0 0.0
        %1628 = vmatprep.subr.mxu0 0.0
        %1629 = vmatpush1.msra.mxu0 0.0
        %1630 = vmatprep.subr.mxu0 0.0
        %1631 = vmatpush1.msra.mxu0 0.0
        %1632 = vmatprep.subr.mxu0 0.0
        %1633 = vmatpush1.msra.mxu0 0.0
        %1634 = vmatprep.subr.mxu0 0.0
        %1635 = vmatpush1.msra.mxu0 0.0
        %1636 = vmatprep.mubr.f32.mxu0 0.0
        %1637 = vmatmul.mubr.f32.gmra.mrb[0].mxu0 %v1570
        %v1638 = vpop.f32.mrb[0].mxu0
        %v1639 = vadd.f32 0.0, %v1638
        %v1640 = vpop.f32.mrb[0].mxu0
        %1641 = vdwg.mxu0
        %v1642 = vmul.f32 %v1639, %v1565
        %1643 = vrot.lane.b32.xlu0 %v335, 32
        %v1644 = vpop.permute.xlu0 %1643
        %1645 = vrot.lane.b32.xlu0 %v406, 32
        %v1646 = vpop.permute.xlu0 %1645
        %v1647 = vsel %vm262, %v1644, 0
        %v1649 = vsel %vm262, %v1646, 0
        %1651 = vmatprep.subr.mxu0 0.0
        %1652 = vmatpush1.xpose.msra.mxu0 %v1649
        %1653 = vmatprep.subr.mxu0 0.0
        %1654 = vmatpush1.xpose.msra.mxu0 0.0
        %1655 = vmatprep.subr.mxu0 0.0
        %1656 = vmatpush1.xpose.msra.mxu0 0.0
        %1657 = vmatprep.subr.mxu0 0.0
        %1658 = vmatpush1.xpose.msra.mxu0 0.0
        %1659 = vmatprep.subr.mxu0 0.0
        %1660 = vmatpush1.xpose.msra.mxu0 0.0
        %1661 = vmatprep.subr.mxu0 0.0
        %1662 = vmatpush1.xpose.msra.mxu0 0.0
        %1663 = vmatprep.subr.mxu0 0.0
        %1664 = vmatpush1.xpose.msra.mxu0 0.0
        %1665 = vmatprep.subr.mxu0 0.0
        %1666 = vmatpush1.xpose.msra.mxu0 0.0
        %1667 = vmatprep.subr.mxu0 0.0
        %1668 = vmatpush1.xpose.msra.mxu0 0.0
        %1669 = vmatprep.subr.mxu0 0.0
        %1670 = vmatpush1.xpose.msra.mxu0 0.0
        %1671 = vmatprep.subr.mxu0 0.0
        %1672 = vmatpush1.xpose.msra.mxu0 0.0
        %1673 = vmatprep.subr.mxu0 0.0
        %1674 = vmatpush1.xpose.msra.mxu0 0.0
        %1675 = vmatprep.subr.mxu0 0.0
        %1676 = vmatpush1.xpose.msra.mxu0 0.0
        %1677 = vmatprep.subr.mxu0 0.0
        %1678 = vmatpush1.xpose.msra.mxu0 0.0
        %1679 = vmatprep.subr.mxu0 0.0
        %1680 = vmatpush1.xpose.msra.mxu0 0.0
        %1681 = vmatprep.subr.mxu0 0.0
        %1682 = vmatpush1.xpose.msra.mxu0 0.0
        %1683 = vmatprep.subr.mxu0 0.0
        %1684 = vmatpush1.xpose.msra.mxu0 0.0
        %1685 = vmatprep.subr.mxu0 0.0
        %1686 = vmatpush1.xpose.msra.mxu0 0.0
        %1687 = vmatprep.subr.mxu0 0.0
        %1688 = vmatpush1.xpose.msra.mxu0 0.0
        %1689 = vmatprep.subr.mxu0 0.0
        %1690 = vmatpush1.xpose.msra.mxu0 0.0
        %1691 = vmatprep.subr.mxu0 0.0
        %1692 = vmatpush1.xpose.msra.mxu0 0.0
        %1693 = vmatprep.subr.mxu0 0.0
        %1694 = vmatpush1.xpose.msra.mxu0 0.0
        %1695 = vmatprep.subr.mxu0 0.0
        %1696 = vmatpush1.xpose.msra.mxu0 0.0
        %1697 = vmatprep.subr.mxu0 0.0
        %1698 = vmatpush1.xpose.msra.mxu0 0.0
        %1699 = vmatprep.subr.mxu0 0.0
        %1700 = vmatpush1.xpose.msra.mxu0 0.0
        %1701 = vmatprep.subr.mxu0 0.0
        %1702 = vmatpush1.xpose.msra.mxu0 0.0
        %1703 = vmatprep.subr.mxu0 0.0
        %1704 = vmatpush1.xpose.msra.mxu0 0.0
        %1705 = vmatprep.subr.mxu0 0.0
        %1706 = vmatpush1.xpose.msra.mxu0 0.0
        %1707 = vmatprep.subr.mxu0 0.0
        %1708 = vmatpush1.xpose.msra.mxu0 0.0
        %1709 = vmatprep.subr.mxu0 0.0
        %1710 = vmatpush1.xpose.msra.mxu0 0.0
        %1711 = vmatprep.subr.mxu0 0.0
        %1712 = vmatpush1.xpose.msra.mxu0 0.0
        %1713 = vmatprep.subr.mxu0 0.0
        %1714 = vmatpush1.xpose.msra.mxu0 0.0
        %1715 = vmatprep.mubr.f32.mxu0 0.0
        %1716 = vmatmul.mubr.f32.gmra.mrb[0].mxu0 %v1647
        %v1717 = vpop.f32.mrb[0].mxu0
        %v1718 = vadd.f32 0.0, %v1717
        %v1719 = vpop.f32.mrb[0].mxu0
        %1720 = vdwg.mxu0
        %v1721 = vmul.f32 %v1718, 0.17677669
        %v1722 = vadd.f32 %v1721, %v480
        %v1723 = vsel %vm559, %v1722, -inf
        %1724 = vmax.xlane.f32.xlu0 %v1723
        %v1725 = vpop.xlane.xlu0 %1724
        %v1726 = vsub.f32 %v1722, %v1725
        %v1727 = vmul.f32 %v1726, 1.442695
        %v1728 = vpow.pop %v1727
        %v1729 = vsel %vm559, %v1728, 0.0
        %1730 = vadd.xlane.f32.xlu0 %v1729
        %v1731 = vpop.xlane.xlu0 %1730
        %v1732 = vrcp.pop %v1731
        %1733 = vrot.lane.b32.xlu0 %v477, 32
        %v1734 = vpop.permute.xlu0 %1733
        %v1737 = vsel %vm559, %v1728, 0
        %1739 = vmatprep.subr.mxu0 0.0
        %1740 = vmatpush1.msra.mxu0 %v1734
        %1741 = vmatprep.subr.mxu0 0.0
        %1742 = vmatpush1.msra.mxu0 0.0
        %1743 = vmatprep.subr.mxu0 0.0
        %1744 = vmatpush1.msra.mxu0 0.0
        %1745 = vmatprep.subr.mxu0 0.0
        %1746 = vmatpush1.msra.mxu0 0.0
        %1747 = vmatprep.subr.mxu0 0.0
        %1748 = vmatpush1.msra.mxu0 0.0
        %1749 = vmatprep.subr.mxu0 0.0
        %1750 = vmatpush1.msra.mxu0 0.0
        %1751 = vmatprep.subr.mxu0 0.0
        %1752 = vmatpush1.msra.mxu0 0.0
        %1753 = vmatprep.subr.mxu0 0.0
        %1754 = vmatpush1.msra.mxu0 0.0
        %1755 = vmatprep.subr.mxu0 0.0
        %1756 = vmatpush1.msra.mxu0 0.0
        %1757 = vmatprep.subr.mxu0 0.0
        %1758 = vmatpush1.msra.mxu0 0.0
        %1759 = vmatprep.subr.mxu0 0.0
        %1760 = vmatpush1.msra.mxu0 0.0
        %1761 = vmatprep.subr.mxu0 0.0
        %1762 = vmatpush1.msra.mxu0 0.0
        %1763 = vmatprep.subr.mxu0 0.0
        %1764 = vmatpush1.msra.mxu0 0.0
        %1765 = vmatprep.subr.mxu0 0.0
        %1766 = vmatpush1.msra.mxu0 0.0
        %1767 = vmatprep.subr.mxu0 0.0
        %1768 = vmatpush1.msra.mxu0 0.0
        %1769 = vmatprep.subr.mxu0 0.0
        %1770 = vmatpush1.msra.mxu0 0.0
        %1771 = vmatprep.subr.mxu0 0.0
        %1772 = vmatpush1.msra.mxu0 0.0
        %1773 = vmatprep.subr.mxu0 0.0
        %1774 = vmatpush1.msra.mxu0 0.0
        %1775 = vmatprep.subr.mxu0 0.0
        %1776 = vmatpush1.msra.mxu0 0.0
        %1777 = vmatprep.subr.mxu0 0.0
        %1778 = vmatpush1.msra.mxu0 0.0
        %1779 = vmatprep.subr.mxu0 0.0
        %1780 = vmatpush1.msra.mxu0 0.0
        %1781 = vmatprep.subr.mxu0 0.0
        %1782 = vmatpush1.msra.mxu0 0.0
        %1783 = vmatprep.subr.mxu0 0.0
        %1784 = vmatpush1.msra.mxu0 0.0
        %1785 = vmatprep.subr.mxu0 0.0
        %1786 = vmatpush1.msra.mxu0 0.0
        %1787 = vmatprep.subr.mxu0 0.0
        %1788 = vmatpush1.msra.mxu0 0.0
        %1789 = vmatprep.subr.mxu0 0.0
        %1790 = vmatpush1.msra.mxu0 0.0
        %1791 = vmatprep.subr.mxu0 0.0
        %1792 = vmatpush1.msra.mxu0 0.0
        %1793 = vmatprep.subr.mxu0 0.0
        %1794 = vmatpush1.msra.mxu0 0.0
        %1795 = vmatprep.subr.mxu0 0.0
        %1796 = vmatpush1.msra.mxu0 0.0
        %1797 = vmatprep.subr.mxu0 0.0
        %1798 = vmatpush1.msra.mxu0 0.0
        %1799 = vmatprep.subr.mxu0 0.0
        %1800 = vmatpush1.msra.mxu0 0.0
        %1801 = vmatprep.subr.mxu0 0.0
        %1802 = vmatpush1.msra.mxu0 0.0
        %1803 = vmatprep.mubr.f32.mxu0 0.0
        %1804 = vmatmul.mubr.f32.gmra.mrb[0].mxu0 %v1737
        %v1805 = vpop.f32.mrb[0].mxu0
        %v1806 = vadd.f32 0.0, %v1805
        %v1807 = vpop.f32.mrb[0].mxu0
        %1808 = vdwg.mxu0
        %v1809 = vmul.f32 %v1806, %v1732
        %1811 = vrot.lane.b32.xlu0 %v811, 32
        %v1812 = vpop.permute.xlu0 %1811
        %1815 = vrot.lane.b32.xlu0 %v978, 64
        %v1816 = vpop.permute.xlu0 %1815
        %1819 = vrot.lane.b32.xlu0 %v1145, 96
        %v1820 = vpop.permute.xlu0 %1819
        %1823 = vrot.lane.b32.xlu0 %v1475, 32
        %v1824 = vpop.permute.xlu0 %1823
        %1827 = vrot.lane.b32.xlu0 %v1642, 64
        %v1828 = vpop.permute.xlu0 %1827
        %1831 = vrot.lane.b32.xlu0 %v1809, 96
        %v1832 = vpop.permute.xlu0 %1831
        %v1834 = vsel %vm262, %v643, %v1812
        %vm1835 = vcmask 523264
        %v1836 = vsel %vm1835, %v1834, %v1816
        %vm1837 = vcmask 785408
        %v1838 = vsel %vm1837, %v1836, %v1820
        %v1839 = vsel %vm262, %v1307, %v1824
        %v1840 = vsel %vm1835, %v1839, %v1828
        %v1841 = vsel %vm1837, %v1840, %v1832
        %v1842 = vld [vmem:[%s3] sm:$0xff]
        %v1843 = vld [vmem:[%s3 + $0x8] sm:$0xff]
        %v1844 = vld [vmem:[%s3 + $0x10] sm:$0xff]
        %v1845 = vld [vmem:[%s3 + $0x18] sm:$0xff]
        %v1846 = vld [vmem:[%s3 + $0x20] sm:$0xff]
        %v1847 = vld [vmem:[%s3 + $0x28] sm:$0xff]
        %v1848 = vld [vmem:[%s3 + $0x30] sm:$0xff]
        %v1849 = vld [vmem:[%s3 + $0x38] sm:$0xff]
        %v1850 = vld [vmem:[%s3 + $0x40] sm:$0xff]
        %v1851 = vld [vmem:[%s3 + $0x48] sm:$0xff]
        %v1852 = vld [vmem:[%s3 + $0x50] sm:$0xff]
        %v1853 = vld [vmem:[%s3 + $0x58] sm:$0xff]
        %v1854 = vld [vmem:[%s3 + $0x60] sm:$0xff]
        %v1855 = vld [vmem:[%s3 + $0x68] sm:$0xff]
        %v1856 = vld [vmem:[%s3 + $0x70] sm:$0xff]
        %v1857 = vld [vmem:[%s3 + $0x78] sm:$0xff]
        %v1858 = vld [vmem:[%s3 + $0x80] sm:$0xff]
        %v1859 = vld [vmem:[%s3 + $0x88] sm:$0xff]
        %v1860 = vld [vmem:[%s3 + $0x90] sm:$0xff]
        %v1861 = vld [vmem:[%s3 + $0x98] sm:$0xff]
        %v1862 = vld [vmem:[%s3 + $0xa0] sm:$0xff]
        %v1863 = vld [vmem:[%s3 + $0xa8] sm:$0xff]
        %v1864 = vld [vmem:[%s3 + $0xb0] sm:$0xff]
        %v1865 = vld [vmem:[%s3 + $0xb8] sm:$0xff]
        %v1866 = vld [vmem:[%s3 + $0xc0] sm:$0xff]
        %v1867 = vld [vmem:[%s3 + $0xc8] sm:$0xff]
        %v1868 = vld [vmem:[%s3 + $0xd0] sm:$0xff]
        %v1869 = vld [vmem:[%s3 + $0xd8] sm:$0xff]
        %v1870 = vld [vmem:[%s3 + $0xe0] sm:$0xff]
        %v1871 = vld [vmem:[%s3 + $0xe8] sm:$0xff]
        %v1872 = vld [vmem:[%s3 + $0xf0] sm:$0xff]
        %v1873 = vld [vmem:[%s3 + $0xf8] sm:$0xff]
        %v1874 = vld [vmem:[%s4] sm:$0x1]
        %v1876 = vlaneseq
        %v1877 = vshrl.u32 %v1876, 7
        %v1878 = vsub.s32 0, %v1877
        %v1879 = vrot.slane %v1874, %v1878
        %1881 = vmatprep.subr.mxu0 0.0
        %1882 = vmatpush1.msra.mxu0 %v1842
        %1883 = vmatprep.subr.mxu0 0.0
        %1884 = vmatpush1.msra.mxu0 %v1843
        %1885 = vmatprep.subr.mxu0 0.0
        %1886 = vmatpush1.msra.mxu0 %v1844
        %1887 = vmatprep.subr.mxu0 0.0
        %1888 = vmatpush1.msra.mxu0 %v1845
        %1889 = vmatprep.subr.mxu0 0.0
        %1890 = vmatpush1.msra.mxu0 %v1846
        %1891 = vmatprep.subr.mxu0 0.0
        %1892 = vmatpush1.msra.mxu0 %v1847
        %1893 = vmatprep.subr.mxu0 0.0
        %1894 = vmatpush1.msra.mxu0 %v1848
        %1895 = vmatprep.subr.mxu0 0.0
        %1896 = vmatpush1.msra.mxu0 %v1849
        %1897 = vmatprep.subr.mxu0 0.0
        %1898 = vmatpush1.msra.mxu0 %v1850
        %1899 = vmatprep.subr.mxu0 0.0
        %1900 = vmatpush1.msra.mxu0 %v1851
        %1901 = vmatprep.subr.mxu0 0.0
        %1902 = vmatpush1.msra.mxu0 %v1852
        %1903 = vmatprep.subr.mxu0 0.0
        %1904 = vmatpush1.msra.mxu0 %v1853
        %1905 = vmatprep.subr.mxu0 0.0
        %1906 = vmatpush1.msra.mxu0 %v1854
        %1907 = vmatprep.subr.mxu0 0.0
        %1908 = vmatpush1.msra.mxu0 %v1855
        %1909 = vmatprep.subr.mxu0 0.0
        %1910 = vmatpush1.msra.mxu0 %v1856
        %1911 = vmatprep.subr.mxu0 0.0
        %1912 = vmatpush1.msra.mxu0 %v1857
        %1913 = vmatprep.subr.mxu0 0.0
        %1914 = vmatpush1.msra.mxu0 %v1858
        %1915 = vmatprep.subr.mxu0 0.0
        %1916 = vmatpush1.msra.mxu0 %v1859
        %1917 = vmatprep.subr.mxu0 0.0
        %1918 = vmatpush1.msra.mxu0 %v1860
        %1919 = vmatprep.subr.mxu0 0.0
        %1920 = vmatpush1.msra.mxu0 %v1861
        %1921 = vmatprep.subr.mxu0 0.0
        %1922 = vmatpush1.msra.mxu0 %v1862
        %1923 = vmatprep.subr.mxu0 0.0
        %1924 = vmatpush1.msra.mxu0 %v1863
        %1925 = vmatprep.subr.mxu0 0.0
        %1926 = vmatpush1.msra.mxu0 %v1864
        %1927 = vmatprep.subr.mxu0 0.0
        %1928 = vmatpush1.msra.mxu0 %v1865
        %1929 = vmatprep.subr.mxu0 0.0
        %1930 = vmatpush1.msra.mxu0 %v1866
        %1931 = vmatprep.subr.mxu0 0.0
        %1932 = vmatpush1.msra.mxu0 %v1867
        %1933 = vmatprep.subr.mxu0 0.0
        %1934 = vmatpush1.msra.mxu0 %v1868
        %1935 = vmatprep.subr.mxu0 0.0
        %1936 = vmatpush1.msra.mxu0 %v1869
        %1937 = vmatprep.subr.mxu0 0.0
        %1938 = vmatpush1.msra.mxu0 %v1870
        %1939 = vmatprep.subr.mxu0 0.0
        %1940 = vmatpush1.msra.mxu0 %v1871
        %1941 = vmatprep.subr.mxu0 0.0
        %1942 = vmatpush1.msra.mxu0 %v1872
        %1943 = vmatprep.subr.mxu0 0.0
        %1944 = vmatpush1.msra.mxu0 %v1873
        %1945 = vmatprep.mubr.f32.mxu0 %v1841
        %1946 = vmatmul.mubr.f32.gmra.mrb[0].mxu0 %v1838
        %v1947 = vpop.f32.mrb[0].mxu0
        %v1948 = vadd.f32 %v1879, %v1947
        %v1949 = vpop.f32.mrb[0].mxu0
        %1950 = vdwg.mxu0
        %1951 = vst.msk [vmem:[%s228] sm:$0xff] %vm262, %v1948
        %s1952 = sand.u32 %s142, 1
        %s1953 = scalar_lea.sflag [#allocation3], %s1952
        %s1954 = sand.u32 %s142, 1
        %s1955 = smul.addr %s1954, 8
        %s1956 = scalar_lea.vmem [#allocation2], %s1955
        // Predicated region
        $region41: #{tpu_custom_call.1} parent=39 // pred_check
          %p1957 = pneg %p152
        $region42: #{tpu_custom_call.1} parent=39 // pred_check_branch
          %1959 = sbr.rel (%p1957) target = $region44
        $region43: #{tpu_custom_call.1} parent=39 // pred_region
          %s1961 = ssub.s32 128, 128
          %1962 = vsyncadd %s1953, %s1961
          %s1963 = smul.addr %s19, 128
          %s1964 = scalar_lea.hbm %s5, %s1963
          %s1966 = sshll.u32 %s1956, 4
          %s1967 = int_to_ptr.vmem [resolvable:$true] %s1966
          %1969 = dma.vmem_to_hbm [thread:$0]  %s1967, 128, %s1964, %s1953
        $region44: #{tpu_custom_call.1} parent=39 // pred_fallthru
          _
      $region40: #{tpu_custom_call.1} parent=5 // pred_fallthru
        _
      %p1970 = scmp.le.s32.totalorder 2, %s14
      // Predicated region
      $region45: #{tpu_custom_call.1} parent=5 // pred_check
        %p1971 = pneg %p1970
      $region46: #{tpu_custom_call.1} parent=5 // pred_check_branch
        %1973 = sbr.rel (%p1971) target = $region48
      $region47: #{tpu_custom_call.1} parent=5 // pred_region
        %s1974 = ssub.s32 %s14, 2
        // Predicated region
        $region49: #{tpu_custom_call.1} parent=47 // pred_check
          %p1975 = pneg %p158
        $region50: #{tpu_custom_call.1} parent=47 // pred_check_branch
          %1977 = sbr.rel (%p1975) target = $region52
        $region51: #{tpu_custom_call.1} parent=47 // pred_region
          %s1978 = sand.u32 %s143, 1
          %s1979 = scalar_lea.sflag [#allocation3], %s1978
          %s1980 = sand.u32 %s143, 1
          %s1981 = smul.addr %s1980, 8
          %s1982 = scalar_lea.vmem [#allocation2], %s1981
          %1983 = dma.done %s1979, 128
        $region52: #{tpu_custom_call.1} parent=47 // pred_fallthru
          _
      $region48: #{tpu_custom_call.1} parent=5 // pred_fallthru
        _
    $region6: #{tpu_custom_call.1} parent=1 // loop_footer
      %s18 = sadd.s32 1, %s14
    $region7: #{tpu_custom_call.1} parent=1 // loop_footer_branch
      %13 = sbr.rel target = $region3
    $region8: #{tpu_custom_call.1} parent=1 // loop_exit
      _
    %1984 = vsyncpa [#allocation3], 1
    %s1985 = scalar_lea.sflag [#allocation3], 1
    %1986 = vsyncpa %s1985, 1

</llo_original>
